<compile_context>
chip_gen: v7x
topology: tpu7x:2x2x1
jax: 0.10.0
libtpu: 0.0.40
codegen_flags: <defaults>
</compile_context>

<pallas_src>
import functools

import jax
import jax.numpy as jnp
from jax.experimental import pallas as pl
from jax.experimental.pallas import tpu as pltpu


def _cbam_kernel(x_ref, w1_ref, w2_ref, col_ref, wsa_ref, o_ref,
                 pooled_ref, ca_ref, *, ks, W, c_chunk):
    """One batch element per grid step.

    x_ref:      (1, C, HW)  input slab (VMEM), HW = H*W on lanes
    w1_ref:     (hid, C)    fc1 weight (Conv2d(C, C//r, 1x1, bias=False))
    w2_ref:     (C, hid)    fc2 weight (Conv2d(C//r, C, 1x1, bias=False))
    col_ref:    (1, HW)     int32, col_ref[0, p] == p % W  (precomputed on host)
    wsa_ref:    (2, ks)     SpatialAttention conv taps, SMEM scalars
    o_ref:      (1, C, HW)  output slab
    pooled_ref: (C, 2)      f32 scratch: [:, 0] avg-pool, [:, 1] max-pool
    ca_ref:     (C, 1)      f32 scratch: channel-attention weights, sublane-major
    """
    _, C, HW = x_ref.shape
    pad = ks // 2
    n_chunks = C // c_chunk
    inv_hw = 1.0 / HW
    inv_c = 1.0 / C

    # ---------------- channel attention: avg / max pooling over (H, W) ----------------
    # Chunked over C so only a (c_chunk, HW) slab is live per step.
    @pl.loop(0, n_chunks)
    def _(i):
        start = pl.multiple_of(i * c_chunk, c_chunk)
        xch = x_ref[0, pl.ds(start, c_chunk), :].astype(jnp.float32)     # (cc, HW)
        pooled_ref[pl.ds(start, c_chunk), :] = jnp.concatenate(
            [jnp.sum(xch, axis=1, keepdims=True) * inv_hw,
             jnp.max(xch, axis=1, keepdims=True)], axis=1)               # (cc, 2)

    # ---------------- channel attention: shared MLP on the MXU ----------------
    # (C, 2) orientation keeps C on sublanes, so ca lands directly as (C, 1) and the
    # later per-channel scale is a lane broadcast (no lane->plane relayout).
    pooled = pooled_ref[...]                                             # (C, 2)
    w1 = w1_ref[...].astype(jnp.float32)                                 # (hid, C)
    w2 = w2_ref[...].astype(jnp.float32)                                 # (C, hid)
    h = jnp.maximum(
        jnp.dot(w1, pooled, preferred_element_type=jnp.float32,
                precision=jax.lax.Precision.HIGHEST), 0.0)               # (hid, 2)
    out2 = jnp.dot(w2, h, preferred_element_type=jnp.float32,
                   precision=jax.lax.Precision.HIGHEST)                  # (C, 2)
    ca_ref[...] = jax.nn.sigmoid(out2[:, 0:1] + out2[:, 1:2])            # (C, 1)

    # ---------------- spatial attention: channel reductions of x*ca ----------------
    # Chunked fori_loop: live state is ~3 small slabs instead of the full (C, HW)
    # product (which would spill at production C).
    def red_body(i, carry):
        s_acc, m_acc = carry
        start = pl.multiple_of(i * c_chunk, c_chunk)
        xc = (x_ref[0, pl.ds(start, c_chunk), :].astype(jnp.float32)
              * ca_ref[pl.ds(start, c_chunk), :])                        # (cc, HW)
        return s_acc + xc, jnp.maximum(m_acc, xc)

    s_acc, m_acc = jax.lax.fori_loop(
        0, n_chunks, red_body,
        (jnp.zeros((c_chunk, HW), jnp.float32),
         jnp.full((c_chunk, HW), -jnp.inf, jnp.float32)))
    avg_c = jnp.sum(s_acc, axis=0, keepdims=True) * inv_c                # (1, HW)
    max_c = jnp.max(m_acc, axis=0, keepdims=True)                        # (1, HW)

    # ---------------- spatial attention: Conv2d(2, 1, (1, ks), pad=(0, ks//2)) ----------------
    # k-tap shift-and-FMA along the flattened lane axis:
    #   conv[p] = sum_t wsa[0,t]*avg_c[p + t - pad] + wsa[1,t]*max_c[p + t - pad]
    # with zero padding along W; taps crossing a row boundary are masked via col = p % W.
    col = col_ref[...]                                                   # (1, HW) int32
    conv = jnp.zeros((1, HW), jnp.float32)
    for t in range(ks):                                                  # static, ks in {3, 7}
        d = t - pad
        tap = wsa_ref[0, t] * avg_c + wsa_ref[1, t] * max_c
        if d != 0:
            tap = pltpu.roll(tap, (-d) % HW, axis=1)                     # rolled[p] = tap[p + d]
        if d > 0:
            tap = jnp.where(col < (W - d), tap, 0.0)                     # (p%W)+d >= W -> zero pad
        elif d < 0:
            tap = jnp.where(col >= (-d), tap, 0.0)                       # (p%W)+d < 0  -> zero pad
        conv = conv + tap
    sa = jax.nn.sigmoid(conv)                                            # (1, HW)

    # ---------------- output: x * ca * sa ----------------
    sa_b = jnp.broadcast_to(sa, (c_chunk, HW))                           # hoisted broadcast

    @pl.loop(0, n_chunks)
    def _(i):
        start = pl.multiple_of(i * c_chunk, c_chunk)
        xc = (x_ref[0, pl.ds(start, c_chunk), :].astype(jnp.float32)
              * ca_ref[pl.ds(start, c_chunk), :])
        o_ref[0, pl.ds(start, c_chunk), :] = (xc * sa_b).astype(o_ref.dtype)


def cbam_block(x, w1, w2, w_sa, kernel_size=7):
    """x: (B, C, H, W). w1: (C//ratio, C), w2: (C, C//ratio), w_sa: (2, kernel_size)."""
    B, C, H, W = x.shape
    hid = w1.shape[0]
    HW = H * W
    c_chunk = 8 if C % 8 == 0 else C

    x2 = x.reshape(B, C, HW)                                  # lane-flattened layout
    col = (jnp.arange(HW, dtype=jnp.int32) % W).reshape(1, HW)
    w_sa = jnp.asarray(w_sa, jnp.float32).reshape(2, kernel_size)   # scalar taps -> SMEM

    kernel = functools.partial(_cbam_kernel, ks=kernel_size, W=W, c_chunk=c_chunk)

    # Generation-aware VMEM budget: ~78% of physical capacity as the cap, but only
    # request what double-buffered in/out slabs + headroom actually need.
    itemsize = jnp.dtype(x.dtype).itemsize
    c_pad = ((C + 7) // 8) * 8
    hw_pad = ((HW + 127) // 128) * 128
    blk_bytes = c_pad * hw_pad * itemsize
    try:
        vmem_cap = int(pltpu.get_tpu_info().vmem_capacity_bytes)
    except Exception:
        vmem_cap = 64 * 2**20
    vmem_limit = int(min(int(0.78 * vmem_cap),
                         max(4 * blk_bytes + (8 << 20), 32 << 20)))

    cost = pl.CostEstimate(
        flops=int(B * (7 * C * HW + 4 * hid * C + 4 * kernel_size * HW)),
        transcendentals=int(B * (C + HW)),
        bytes_accessed=int(2 * B * C * HW * itemsize + 8 * hid * C + 4 * HW),
    )

    out = pl.pallas_call(
        kernel,
        out_shape=jax.ShapeDtypeStruct((B, C, HW), x.dtype),
        grid_spec=pltpu.PrefetchScalarGridSpec(
            num_scalar_prefetch=0,
            grid=(B,),
            in_specs=[
                pl.BlockSpec((1, C, HW), lambda b: (b, 0, 0)),
                pl.BlockSpec((hid, C), lambda b: (0, 0)),
                pl.BlockSpec((C, hid), lambda b: (0, 0)),
                pl.BlockSpec((1, HW), lambda b: (0, 0)),
                pl.BlockSpec(memory_space=pltpu.MemorySpace.SMEM),
            ],
            out_specs=pl.BlockSpec((1, C, HW), lambda b: (b, 0, 0)),
            scratch_shapes=[
                pltpu.VMEM((C, 2), jnp.float32),   # pooled (avg, max)
                pltpu.VMEM((C, 1), jnp.float32),   # channel attention weights
            ],
        ),
        compiler_params=pltpu.CompilerParams(
            dimension_semantics=("parallel",),
            vmem_limit_bytes=vmem_limit,
        ),
        cost_estimate=cost,
    )(x2, w1, w2, col, w_sa)
    return out.reshape(B, C, H, W)


def reference(x, w1, w2, w_sa, kernel_size):
    """Pure-JAX reference matching the PyTorch cbamblock1 forward."""
    pad = kernel_size // 2
    avg_p = x.mean(axis=(2, 3))                               # (B, C)
    max_p = x.max(axis=(2, 3))                                # (B, C)

    def mlp(v):
        return jnp.maximum(v @ w1.T, 0.0) @ w2.T

    ca = jax.nn.sigmoid(mlp(avg_p) + mlp(max_p))              # (B, C)
    x_ca = x * ca[:, :, None, None]

    stacked = jnp.concatenate([x_ca.mean(axis=1, keepdims=True),
                               x_ca.max(axis=1, keepdims=True)], axis=1)  # (B, 2, H, W)
    w4 = w_sa.reshape(1, 2, 1, kernel_size)
    conv = jax.lax.conv_general_dilated(
        stacked, w4, window_strides=(1, 1),
        padding=((0, 0), (pad, pad)),
        dimension_numbers=("NCHW", "OIHW", "NCHW"))
    sa = jax.nn.sigmoid(conv)
    return x_ca * sa


if __name__ == "__main__":
    configs = [
        dict(B=2, C=32, H=8, W=128, ratio=16, ks=7),   # lane-aligned W
        dict(B=1, C=16, H=4, W=64, ratio=4, ks=3),     # W != 128: exercises col%W masking
    ]
    key = jax.random.PRNGKey(0)
    for cfg in configs:
        B, C, H, W = cfg["B"], cfg["C"], cfg["H"], cfg["W"]
        ratio, ks = cfg["ratio"], cfg["ks"]
        hid = C // ratio
        key, k1, k2, k3, k4 = jax.random.split(key, 5)
        x = jax.random.normal(k1, (B, C, H, W), jnp.float32)
        w1 = jax.random.normal(k2, (hid, C), jnp.float32) * 0.1   # fc1 weight
        w2 = jax.random.normal(k3, (C, hid), jnp.float32) * 0.1   # fc2 weight
        w_sa = jax.random.normal(k4, (2, ks), jnp.float32) * 0.1  # SpatialAttention conv

        out = jax.block_until_ready(cbam_block(x, w1, w2, w_sa, ks))
        ref = reference(x, w1, w2, w_sa, ks)
        max_err = float(jnp.max(jnp.abs(out - ref)))
        assert jnp.allclose(out, ref, atol=1e-4, rtol=1e-4), f"{cfg}: max_err={max_err}"
    print("KERNEL_OK")
</pallas_src>

<mosaic_0001>
module attributes {stable_mosaic.version = 11 : i64} {
  func.func @_cbam_kernel(%arg0: i32, %arg1: memref<1x32x1024xf32, #tpu.memory_space<vmem>>, %arg2: memref<2x32xf32, #tpu.memory_space<vmem>>, %arg3: memref<32x2xf32, #tpu.memory_space<vmem>>, %arg4: memref<1x1024xi32, #tpu.memory_space<vmem>>, %arg5: memref<2x7xf32, #tpu.memory_space<smem>>, %arg6: memref<1x32x1024xf32, #tpu.memory_space<vmem>>, %arg7: memref<32x2xf32, #tpu.memory_space<vmem>>, %arg8: memref<32x1xf32, #tpu.memory_space<vmem>>) attributes {dimension_semantics = [#tpu.dimension_semantics<parallel>], iteration_bounds = array<i64: 2>, scalar_prefetch = 0 : i64, scratch_operands = 2 : i64, tpu.core_type = #tpu.core_type<tc>, window_params = [{transform_indices = @transform_0, window_bounds = array<i64: 1, 32, 1024>}, {pipeline_mode = #tpu.pipeline_mode<synchronous>, transform_indices = @transform_1, window_bounds = array<i64: 2, 32>}, {pipeline_mode = #tpu.pipeline_mode<synchronous>, transform_indices = @transform_2, window_bounds = array<i64: 32, 2>}, {pipeline_mode = #tpu.pipeline_mode<synchronous>, transform_indices = @transform_3, window_bounds = array<i64: 1, 1024>}, {transform_indices = @transform_4, window_bounds = array<i64: 2, 7>}, {transform_indices = @transform_5, window_bounds = array<i64: 1, 32, 1024>}]} {
    %c0_i32 = arith.constant 0 : i32
    %c4_i32 = arith.constant 4 : i32
    %0 = arith.addi %c0_i32, %c4_i32 : i32
    %c1_i32 = arith.constant 1 : i32
    scf.for %arg9 = %c0_i32 to %0 step %c1_i32  : i32 {
      %c1_i32_60 = arith.constant 1 : i32
      %123 = arith.muli %arg9, %c1_i32_60 : i32
      %c0_i32_61 = arith.constant 0 : i32
      %124 = arith.addi %c0_i32_61, %123 : i32
      %c8_i32 = arith.constant 8 : i32
      %125 = arith.muli %124, %c8_i32 : i32
      %126 = tpu.assume_multiple %125, 8 : i32
      %c0_62 = arith.constant 0 : index
      %127 = arith.index_cast %126 : i32 to index
      %c0_63 = arith.constant 0 : index
      %128 = vector.load %arg1[%c0_62, %127, %c0_63] : memref<1x32x1024xf32, #tpu.memory_space<vmem>>, vector<1x8x1024xf32>
      %129 = vector.shape_cast %128 : vector<1x8x1024xf32> to vector<8x1024xf32>
      %cst_64 = arith.constant dense<0.000000e+00> : vector<8xf32>
      %130 = vector.multi_reduction <add>, %129, %cst_64 [1] : vector<8x1024xf32> to vector<8xf32>
      %131 = vector.shape_cast %130 : vector<8xf32> to vector<8x1xf32>
      %cst_65 = arith.constant 9.765625E-4 : f32
      %132 = vector.broadcast %cst_65 : f32 to vector<8x1xf32>
      %133 = arith.mulf %131, %132 : vector<8x1xf32>
      %cst_66 = arith.constant dense<0xFF800000> : vector<8xf32>
      %134 = vector.multi_reduction <maximumf>, %129, %cst_66 [1] : vector<8x1024xf32> to vector<8xf32>
      %135 = vector.shape_cast %134 : vector<8xf32> to vector<8x1xf32>
      %136 = tpu.concatenate %133, %135 in 1 : vector<8x1xf32>, vector<8x1xf32> -> vector<8x2xf32>
      %137 = arith.index_cast %126 : i32 to index
      %c0_67 = arith.constant 0 : index
      %138 = vector.load %arg7[%137, %c0_67] : memref<32x2xf32, #tpu.memory_space<vmem>>, vector<8x2xf32>
      tpu.vector_store %arg7[%137, %c0_67], %136 {strides = array<i32>} : memref<32x2xf32, #tpu.memory_space<vmem>>, vector<8x2xf32>,
    }
    %c4_i32_0 = arith.constant 4 : i32
    %c0 = arith.constant 0 : index
    %c0_1 = arith.constant 0 : index
    %1 = vector.load %arg7[%c0, %c0_1] : memref<32x2xf32, #tpu.memory_space<vmem>>, vector<32x2xf32>
    %c0_2 = arith.constant 0 : index
    %c0_3 = arith.constant 0 : index
    %2 = vector.load %arg2[%c0_2, %c0_3] : memref<2x32xf32, #tpu.memory_space<vmem>>, vector<2x32xf32>
    %c0_4 = arith.constant 0 : index
    %c0_5 = arith.constant 0 : index
    %3 = vector.load %arg3[%c0_4, %c0_5] : memref<32x2xf32, #tpu.memory_space<vmem>>, vector<32x2xf32>
    %cst = arith.constant dense<0.000000e+00> : vector<2x2xf32>
    %4 = tpu.matmul %2, %1, %cst {dimension_numbers = #tpu.dot_dimension_numbers<[1], [0], [0], [1], [0, 0, 1, 1], [], []>, precision = #tpu.contract_precision<fp32>} : vector<2x32xf32>, vector<32x2xf32>, vector<2x2xf32> -> vector<2x2xf32>
    %cst_6 = arith.constant 0.000000e+00 : f32
    %5 = vector.broadcast %cst_6 : f32 to vector<2x2xf32>
    %6 = arith.maximumf %4, %5 : vector<2x2xf32>
    %cst_7 = arith.constant dense<0.000000e+00> : vector<32x2xf32>
    %7 = tpu.matmul %3, %6, %cst_7 {dimension_numbers = #tpu.dot_dimension_numbers<[1], [0], [0], [1], [0, 0, 1, 1], [], []>, precision = #tpu.contract_precision<fp32>} : vector<32x2xf32>, vector<2x2xf32>, vector<32x2xf32> -> vector<32x2xf32>
    %8 = vector.extract_strided_slice %7 {offsets = [0, 0], sizes = [32, 1], strides = [1, 1]} : vector<32x2xf32> to vector<32x1xf32>
    %9 = vector.extract_strided_slice %7 {offsets = [0, 1], sizes = [32, 1], strides = [1, 1]} : vector<32x2xf32> to vector<32x1xf32>
    %10 = arith.addf %8, %9 : vector<32x1xf32>
    %11 = arith.negf %10 : vector<32x1xf32>
    %12 = math.exp %11 : vector<32x1xf32>
    %cst_8 = arith.constant 1.000000e+00 : f32
    %13 = vector.broadcast %cst_8 : f32 to vector<32x1xf32>
    %14 = arith.addf %13, %12 : vector<32x1xf32>
    %15 = arith.divf %13, %14 : vector<32x1xf32>
    %c0_9 = arith.constant 0 : index
    %c0_10 = arith.constant 0 : index
    %16 = vector.load %arg8[%c0_9, %c0_10] : memref<32x1xf32, #tpu.memory_space<vmem>>, vector<32x1xf32>
    tpu.vector_store %arg8[%c0_9, %c0_10], %15 {strides = array<i32>} : memref<32x1xf32, #tpu.memory_space<vmem>>, vector<32x1xf32>,
    %cst_11 = arith.constant 0.000000e+00 : f32
    %17 = vector.broadcast %cst_11 : f32 to vector<8x1024xf32>
    %cst_12 = arith.constant 0xFF800000 : f32
    %18 = vector.broadcast %cst_12 : f32 to vector<8x1024xf32>
    %c0_i32_13 = arith.constant 0 : i32
    %c4_i32_14 = arith.constant 4 : i32
    %19 = arith.addi %c0_i32_13, %c4_i32_14 : i32
    %c1_i32_15 = arith.constant 1 : i32
    %20:2 = scf.for %arg9 = %c0_i32_13 to %19 step %c1_i32_15 iter_args(%arg10 = %17, %arg11 = %18) -> (vector<8x1024xf32>, vector<8x1024xf32>)  : i32 {
      %c8_i32 = arith.constant 8 : i32
      %123 = arith.muli %arg9, %c8_i32 : i32
      %124 = tpu.assume_multiple %123, 8 : i32
      %c0_60 = arith.constant 0 : index
      %125 = arith.index_cast %124 : i32 to index
      %c0_61 = arith.constant 0 : index
      %126 = vector.load %arg1[%c0_60, %125, %c0_61] : memref<1x32x1024xf32, #tpu.memory_space<vmem>>, vector<1x8x1024xf32>
      %127 = vector.shape_cast %126 : vector<1x8x1024xf32> to vector<8x1024xf32>
      %128 = arith.index_cast %124 : i32 to index
      %c0_62 = arith.constant 0 : index
      %129 = vector.load %arg8[%128, %c0_62] : memref<32x1xf32, #tpu.memory_space<vmem>>, vector<8x1xf32>
      %130 = vector.broadcast %129 : vector<8x1xf32> to vector<8x1024xf32>
      %131 = arith.mulf %127, %130 : vector<8x1024xf32>
      %132 = arith.addf %arg10, %131 : vector<8x1024xf32>
      %133 = arith.maximumf %arg11, %131 : vector<8x1024xf32>
      scf.yield %132, %133 : vector<8x1024xf32>, vector<8x1024xf32>
    }
    %c4_i32_16 = arith.constant 4 : i32
    %cst_17 = arith.constant dense<0.000000e+00> : vector<1024xf32>
    %21 = vector.multi_reduction <add>, %20#0, %cst_17 [0] : vector<8x1024xf32> to vector<1024xf32>
    %22 = vector.shape_cast %21 : vector<1024xf32> to vector<1x1024xf32>
    %cst_18 = arith.constant 3.125000e-02 : f32
    %23 = vector.broadcast %cst_18 : f32 to vector<1x1024xf32>
    %24 = arith.mulf %22, %23 : vector<1x1024xf32>
    %cst_19 = arith.constant dense<0xFF800000> : vector<1024xf32>
    %25 = vector.multi_reduction <maximumf>, %20#1, %cst_19 [0] : vector<8x1024xf32> to vector<1024xf32>
    %26 = vector.shape_cast %25 : vector<1024xf32> to vector<1x1024xf32>
    %c0_20 = arith.constant 0 : index
    %c0_21 = arith.constant 0 : index
    %27 = vector.load %arg4[%c0_20, %c0_21] : memref<1x1024xi32, #tpu.memory_space<vmem>>, vector<1x1024xi32>
    %cst_22 = arith.constant 0.000000e+00 : f32
    %28 = vector.broadcast %cst_22 : f32 to vector<1x1024xf32>
    %c0_23 = arith.constant 0 : index
    %c0_24 = arith.constant 0 : index
    %29 = memref.load %arg5[%c0_23, %c0_24] : memref<2x7xf32, #tpu.memory_space<smem>>
    %30 = vector.broadcast %29 : f32 to vector<1x1024xf32>
    %31 = arith.mulf %30, %24 : vector<1x1024xf32>
    %c1 = arith.constant 1 : index
    %c0_25 = arith.constant 0 : index
    %32 = memref.load %arg5[%c1, %c0_25] : memref<2x7xf32, #tpu.memory_space<smem>>
    %33 = vector.broadcast %32 : f32 to vector<1x1024xf32>
    %34 = arith.mulf %33, %26 : vector<1x1024xf32>
    %35 = arith.addf %31, %34 : vector<1x1024xf32>
    %c3_i32 = arith.constant 3 : i32
    %36 = tpu.dynamic_rotate %35 by %c3_i32 dim 1 : vector<1x1024xf32>, i32 -> vector<1x1024xf32>
    %c3_i32_26 = arith.constant 3 : i32
    %37 = vector.broadcast %c3_i32_26 : i32 to vector<1x1024xi32>
    %38 = arith.cmpi sge, %27, %37 : vector<1x1024xi32>
    %cst_27 = arith.constant 0.000000e+00 : f32
    %39 = vector.broadcast %cst_27 : f32 to vector<1x1024xf32>
    %40 = arith.select %38, %36, %39 : vector<1x1024xi1>, vector<1x1024xf32>
    %41 = arith.addf %28, %40 : vector<1x1024xf32>
    %c0_28 = arith.constant 0 : index
    %c1_29 = arith.constant 1 : index
    %42 = memref.load %arg5[%c0_28, %c1_29] : memref<2x7xf32, #tpu.memory_space<smem>>
    %43 = vector.broadcast %42 : f32 to vector<1x1024xf32>
    %44 = arith.mulf %43, %24 : vector<1x1024xf32>
    %c1_30 = arith.constant 1 : index
    %c1_31 = arith.constant 1 : index
    %45 = memref.load %arg5[%c1_30, %c1_31] : memref<2x7xf32, #tpu.memory_space<smem>>
    %46 = vector.broadcast %45 : f32 to vector<1x1024xf32>
    %47 = arith.mulf %46, %26 : vector<1x1024xf32>
    %48 = arith.addf %44, %47 : vector<1x1024xf32>
    %c2_i32 = arith.constant 2 : i32
    %49 = tpu.dynamic_rotate %48 by %c2_i32 dim 1 : vector<1x1024xf32>, i32 -> vector<1x1024xf32>
    %c2_i32_32 = arith.constant 2 : i32
    %50 = vector.broadcast %c2_i32_32 : i32 to vector<1x1024xi32>
    %51 = arith.cmpi sge, %27, %50 : vector<1x1024xi32>
    %cst_33 = arith.constant 0.000000e+00 : f32
    %52 = vector.broadcast %cst_33 : f32 to vector<1x1024xf32>
    %53 = arith.select %51, %49, %52 : vector<1x1024xi1>, vector<1x1024xf32>
    %54 = arith.addf %41, %53 : vector<1x1024xf32>
    %c0_34 = arith.constant 0 : index
    %c2 = arith.constant 2 : index
    %55 = memref.load %arg5[%c0_34, %c2] : memref<2x7xf32, #tpu.memory_space<smem>>
    %56 = vector.broadcast %55 : f32 to vector<1x1024xf32>
    %57 = arith.mulf %56, %24 : vector<1x1024xf32>
    %c1_35 = arith.constant 1 : index
    %c2_36 = arith.constant 2 : index
    %58 = memref.load %arg5[%c1_35, %c2_36] : memref<2x7xf32, #tpu.memory_space<smem>>
    %59 = vector.broadcast %58 : f32 to vector<1x1024xf32>
    %60 = arith.mulf %59, %26 : vector<1x1024xf32>
    %61 = arith.addf %57, %60 : vector<1x1024xf32>
    %c1_i32_37 = arith.constant 1 : i32
    %62 = tpu.dynamic_rotate %61 by %c1_i32_37 dim 1 : vector<1x1024xf32>, i32 -> vector<1x1024xf32>
    %c1_i32_38 = arith.constant 1 : i32
    %63 = vector.broadcast %c1_i32_38 : i32 to vector<1x1024xi32>
    %64 = arith.cmpi sge, %27, %63 : vector<1x1024xi32>
    %cst_39 = arith.constant 0.000000e+00 : f32
    %65 = vector.broadcast %cst_39 : f32 to vector<1x1024xf32>
    %66 = arith.select %64, %62, %65 : vector<1x1024xi1>, vector<1x1024xf32>
    %67 = arith.addf %54, %66 : vector<1x1024xf32>
    %c0_40 = arith.constant 0 : index
    %c3 = arith.constant 3 : index
    %68 = memref.load %arg5[%c0_40, %c3] : memref<2x7xf32, #tpu.memory_space<smem>>
    %69 = vector.broadcast %68 : f32 to vector<1x1024xf32>
    %70 = arith.mulf %69, %24 : vector<1x1024xf32>
    %c1_41 = arith.constant 1 : index
    %c3_42 = arith.constant 3 : index
    %71 = memref.load %arg5[%c1_41, %c3_42] : memref<2x7xf32, #tpu.memory_space<smem>>
    %72 = vector.broadcast %71 : f32 to vector<1x1024xf32>
    %73 = arith.mulf %72, %26 : vector<1x1024xf32>
    %74 = arith.addf %70, %73 : vector<1x1024xf32>
    %75 = arith.addf %67, %74 : vector<1x1024xf32>
    %c0_43 = arith.constant 0 : index
    %c4 = arith.constant 4 : index
    %76 = memref.load %arg5[%c0_43, %c4] : memref<2x7xf32, #tpu.memory_space<smem>>
    %77 = vector.broadcast %76 : f32 to vector<1x1024xf32>
    %78 = arith.mulf %77, %24 : vector<1x1024xf32>
    %c1_44 = arith.constant 1 : index
    %c4_45 = arith.constant 4 : index
    %79 = memref.load %arg5[%c1_44, %c4_45] : memref<2x7xf32, #tpu.memory_space<smem>>
    %80 = vector.broadcast %79 : f32 to vector<1x1024xf32>
    %81 = arith.mulf %80, %26 : vector<1x1024xf32>
    %82 = arith.addf %78, %81 : vector<1x1024xf32>
    %c1023_i32 = arith.constant 1023 : i32
    %83 = tpu.dynamic_rotate %82 by %c1023_i32 dim 1 : vector<1x1024xf32>, i32 -> vector<1x1024xf32>
    %c127_i32 = arith.constant 127 : i32
    %84 = vector.broadcast %c127_i32 : i32 to vector<1x1024xi32>
    %85 = arith.cmpi slt, %27, %84 : vector<1x1024xi32>
    %cst_46 = arith.constant 0.000000e+00 : f32
    %86 = vector.broadcast %cst_46 : f32 to vector<1x1024xf32>
    %87 = arith.select %85, %83, %86 : vector<1x1024xi1>, vector<1x1024xf32>
    %88 = arith.addf %75, %87 : vector<1x1024xf32>
    %c0_47 = arith.constant 0 : index
    %c5 = arith.constant 5 : index
    %89 = memref.load %arg5[%c0_47, %c5] : memref<2x7xf32, #tpu.memory_space<smem>>
    %90 = vector.broadcast %89 : f32 to vector<1x1024xf32>
    %91 = arith.mulf %90, %24 : vector<1x1024xf32>
    %c1_48 = arith.constant 1 : index
    %c5_49 = arith.constant 5 : index
    %92 = memref.load %arg5[%c1_48, %c5_49] : memref<2x7xf32, #tpu.memory_space<smem>>
    %93 = vector.broadcast %92 : f32 to vector<1x1024xf32>
    %94 = arith.mulf %93, %26 : vector<1x1024xf32>
    %95 = arith.addf %91, %94 : vector<1x1024xf32>
    %c1022_i32 = arith.constant 1022 : i32
    %96 = tpu.dynamic_rotate %95 by %c1022_i32 dim 1 : vector<1x1024xf32>, i32 -> vector<1x1024xf32>
    %c126_i32 = arith.constant 126 : i32
    %97 = vector.broadcast %c126_i32 : i32 to vector<1x1024xi32>
    %98 = arith.cmpi slt, %27, %97 : vector<1x1024xi32>
    %cst_50 = arith.constant 0.000000e+00 : f32
    %99 = vector.broadcast %cst_50 : f32 to vector<1x1024xf32>
    %100 = arith.select %98, %96, %99 : vector<1x1024xi1>, vector<1x1024xf32>
    %101 = arith.addf %88, %100 : vector<1x1024xf32>
    %c0_51 = arith.constant 0 : index
    %c6 = arith.constant 6 : index
    %102 = memref.load %arg5[%c0_51, %c6] : memref<2x7xf32, #tpu.memory_space<smem>>
    %103 = vector.broadcast %102 : f32 to vector<1x1024xf32>
    %104 = arith.mulf %103, %24 : vector<1x1024xf32>
    %c1_52 = arith.constant 1 : index
    %c6_53 = arith.constant 6 : index
    %105 = memref.load %arg5[%c1_52, %c6_53] : memref<2x7xf32, #tpu.memory_space<smem>>
    %106 = vector.broadcast %105 : f32 to vector<1x1024xf32>
    %107 = arith.mulf %106, %26 : vector<1x1024xf32>
    %108 = arith.addf %104, %107 : vector<1x1024xf32>
    %c1021_i32 = arith.constant 1021 : i32
    %109 = tpu.dynamic_rotate %108 by %c1021_i32 dim 1 : vector<1x1024xf32>, i32 -> vector<1x1024xf32>
    %c125_i32 = arith.constant 125 : i32
    %110 = vector.broadcast %c125_i32 : i32 to vector<1x1024xi32>
    %111 = arith.cmpi slt, %27, %110 : vector<1x1024xi32>
    %cst_54 = arith.constant 0.000000e+00 : f32
    %112 = vector.broadcast %cst_54 : f32 to vector<1x1024xf32>
    %113 = arith.select %111, %109, %112 : vector<1x1024xi1>, vector<1x1024xf32>
    %114 = arith.addf %101, %113 : vector<1x1024xf32>
    %115 = arith.negf %114 : vector<1x1024xf32>
    %116 = math.exp %115 : vector<1x1024xf32>
    %cst_55 = arith.constant 1.000000e+00 : f32
    %117 = vector.broadcast %cst_55 : f32 to vector<1x1024xf32>
    %118 = arith.addf %117, %116 : vector<1x1024xf32>
    %119 = arith.divf %117, %118 : vector<1x1024xf32>
    %120 = vector.shape_cast %119 : vector<1x1024xf32> to vector<1x1024xf32>
    %121 = vector.broadcast %120 : vector<1x1024xf32> to vector<8x1024xf32>
    %c0_i32_56 = arith.constant 0 : i32
    %c4_i32_57 = arith.constant 4 : i32
    %122 = arith.addi %c0_i32_56, %c4_i32_57 : i32
    %c1_i32_58 = arith.constant 1 : i32
    scf.for %arg9 = %c0_i32_56 to %122 step %c1_i32_58  : i32 {
      %c1_i32_60 = arith.constant 1 : i32
      %123 = arith.muli %arg9, %c1_i32_60 : i32
      %c0_i32_61 = arith.constant 0 : i32
      %124 = arith.addi %c0_i32_61, %123 : i32
      %c8_i32 = arith.constant 8 : i32
      %125 = arith.muli %124, %c8_i32 : i32
      %126 = tpu.assume_multiple %125, 8 : i32
      %c0_62 = arith.constant 0 : index
      %127 = arith.index_cast %126 : i32 to index
      %c0_63 = arith.constant 0 : index
      %128 = vector.load %arg1[%c0_62, %127, %c0_63] : memref<1x32x1024xf32, #tpu.memory_space<vmem>>, vector<1x8x1024xf32>
      %129 = vector.shape_cast %128 : vector<1x8x1024xf32> to vector<8x1024xf32>
      %130 = arith.index_cast %126 : i32 to index
      %c0_64 = arith.constant 0 : index
      %131 = vector.load %arg8[%130, %c0_64] : memref<32x1xf32, #tpu.memory_space<vmem>>, vector<8x1xf32>
      %132 = vector.broadcast %131 : vector<8x1xf32> to vector<8x1024xf32>
      %133 = arith.mulf %129, %132 : vector<8x1024xf32>
      %134 = arith.mulf %133, %121 : vector<8x1024xf32>
      %c0_65 = arith.constant 0 : index
      %135 = arith.index_cast %126 : i32 to index
      %c0_66 = arith.constant 0 : index
      %136 = vector.load %arg6[%c0_65, %135, %c0_66] : memref<1x32x1024xf32, #tpu.memory_space<vmem>>, vector<1x8x1024xf32>
      %137 = vector.shape_cast %136 : vector<1x8x1024xf32> to vector<8x1024xf32>
      %138 = vector.shape_cast %134 : vector<8x1024xf32> to vector<1x8x1024xf32>
      tpu.vector_store %arg6[%c0_65, %135, %c0_66], %138 {strides = array<i32>} : memref<1x32x1024xf32, #tpu.memory_space<vmem>>, vector<1x8x1024xf32>,
    }
    %c4_i32_59 = arith.constant 4 : i32
    return
  }
  func.func @transform_0(%arg0: i32) -> (i32, i32, i32) {
    %c0_i32 = arith.constant 0 : i32
    %c0_i32_0 = arith.constant 0 : i32
    %c0_i32_1 = arith.constant 0 : i32
    return %arg0, %c0_i32, %c0_i32_0 : i32, i32, i32
  }
  func.func @transform_1(%arg0: i32) -> (i32, i32) {
    %c0_i32 = arith.constant 0 : i32
    %c0_i32_0 = arith.constant 0 : i32
    %c0_i32_1 = arith.constant 0 : i32
    return %c0_i32, %c0_i32_0 : i32, i32
  }
  func.func @transform_2(%arg0: i32) -> (i32, i32) {
    %c0_i32 = arith.constant 0 : i32
    %c0_i32_0 = arith.constant 0 : i32
    %c0_i32_1 = arith.constant 0 : i32
    return %c0_i32, %c0_i32_0 : i32, i32
  }
  func.func @transform_3(%arg0: i32) -> (i32, i32) {
    %c0_i32 = arith.constant 0 : i32
    %c0_i32_0 = arith.constant 0 : i32
    %c0_i32_1 = arith.constant 0 : i32
    return %c0_i32, %c0_i32_0 : i32, i32
  }
  func.func @transform_4(%arg0: i32) -> (i32, i32) {
    %c0_i32 = arith.constant 0 : i32
    %c0_i32_0 = arith.constant 0 : i32
    %c0_i32_1 = arith.constant 0 : i32
    return %c0_i32, %c0_i32_0 : i32, i32
  }
  func.func @transform_5(%arg0: i32) -> (i32, i32, i32) {
    %c0_i32 = arith.constant 0 : i32
    %c0_i32_0 = arith.constant 0 : i32
    %c0_i32_1 = arith.constant 0 : i32
    return %arg0, %c0_i32, %c0_i32_0 : i32, i32, i32
  }
}

</mosaic_0001>

<llo_original>
// kernel: tpu_custom_call.1
$region0: #{tpu_custom_call.1}
  #allocation0 [shape = 'u32[]', space=smem, size = 0x4, offset = 0x4, fixed_abs, tag = 'smem constant byte address 0x4 - core index']
  #allocation1 [shape = 'u32[144,128]{1,0:T(1,128)}', space=vmem, size = 0x12000, scoped, tag = 'internal scratch']
  #allocation2 [shape = 'f32[32,2]{1,0:T(8,128)}', space=vmem, size = 0x4000, scoped, tag = 'scratch operand']
  #allocation3 [shape = 'f32[32,1]{1,0:T(8,128)}', space=vmem, size = 0x4000, scoped, tag = 'scratch operand']
  %s0 = inlined_call_operand.hbm [shape: f32[2,32,1024], index: 0, kind: input, shape index: {}]
  %s1 = inlined_call_operand.vmem [shape: f32[2,32], index: 1, kind: input, shape index: {}]
  %s2 = inlined_call_operand.vmem [shape: f32[32,2], index: 2, kind: input, shape index: {}]
  %s3 = inlined_call_operand.vmem [shape: s32[1,1024], index: 3, kind: input, shape index: {}]
  %s4 = inlined_call_operand.vmem [shape: f32[2,7], index: 4, kind: input, shape index: {}]
  %s5 = inlined_call_operand.hbm [shape: f32[2,32,1024], index: 5, kind: output, shape index: {}]
  %s6 = sld [smem:[#allocation0]]
  $region82: #{tpu_custom_call.1} parent=0
    _
  %s8 = ssub.s32 1, %s6
  %s9 = scalar_select 0, %s8, %s6
  $region1: #{tpu_custom_call.1} parent=0
    #allocation4 [shape = 'u8[262144]{0}', space=vmem, size = 0x40000, scoped, tag = 'input window, operand 0']
    #allocation5 [shape = 's32[2]{0}', space=sflag, size = 0x8, scoped, tag = 'scoped memory for tpu_custom_call.1']
    #allocation6 [shape = 's32[2]{0}', space=sflag, size = 0x8, scoped, tag = 'scoped memory for tpu_custom_call.1']
    #allocation7 [shape = 's32[2]{0}', space=sflag, size = 0x8, scoped, tag = 'scoped memory for tpu_custom_call.1']
    #allocation8 [shape = 'u8[1024]{0}', space=smem, size = 0x400, scoped, tag = 'input window, operand 4, single buffered']
    #allocation9 [shape = 'u8[262144]{0}', space=vmem, size = 0x40000, scoped, tag = 'output window, operand 0']
    %10 = vsyncpa [#allocation5], 0
    %s11 = scalar_lea.sflag [#allocation5], 1
    %12 = vsyncpa %s11, 0
    %13 = vsyncpa [#allocation7], 0
    %14 = vsyncpa [#allocation6], 0
    %s15 = scalar_lea.sflag [#allocation6], 1
    %16 = vsyncpa %s15, 0
    loop: start=0, step=1, limit=4
    $region2: #{tpu_custom_call.1} parent=1 // loop_pre_header
      _
    $region3: #{tpu_custom_call.1} parent=1 // loop_header
      %s18 = sphi 0, %s22
      %p19 = scmp.ge.s32.totalorder %s18, 4
      %s28 = sphi 0, %s30
      %s31 = sphi 0, %s28
      %s32 = sphi 0, %s31
      %s48 = sphi 0, %s32
      %s52 = sphi 0, %s52
      %s54 = sphi 0, %s52
      %s55 = sphi 0, %s54
      %s69 = sphi 0, %s55
      %s73 = sphi 0, %s73
      %s75 = sphi 0, %s73
      %s76 = sphi 0, %s75
      %s90 = sphi 0, %s76
      %s94 = sphi 0, %s94
      %s96 = sphi 0, %s94
      %s97 = sphi 0, %s96
      %s111 = sphi 0, %s97
      %s115 = sphi 0, %s115
      %s117 = sphi 0, %s115
      %s118 = sphi 0, %s117
      %s132 = sphi 0, %s118
      %s138 = sphi 0, %s140
      %s141 = sphi 0, %s138
      %s142 = sphi 0, %s141
      %s158 = sphi 0, %s142
    $region4: #{tpu_custom_call.1} parent=1 // loop_header_branch
      %21 = sbr.rel (%p19) target = $region8
    $region5: #{tpu_custom_call.1} parent=1 // loop_body
      %s23 = ssub.s32 %s18, 1
      %s24 = ssub.s32 %s18, 2
      %s25 = sadd.s32 %s18, 1
      %s26 = ssub.s32 %s18, %s25
      %p27 = scmp.eq.s32.totalorder %s26, 0
      %s29 = sadd.s32 %s28, 1
      %s30 = scalar_select %p27, %s28, %s29
      %p33 = pneg %p27
      %p34 = scmp.eq.s32.totalorder %s18, 1
      %p35 = por %p33, %p34
      %p36 = scmp.ne.s32.totalorder %s28, %s31
      %p37 = scmp.eq.s32.totalorder %s18, 0
      %p38 = por %p36, %p37
      %p39 = scmp.ne.s32.totalorder %s28, %s31
      %p40 = scmp.eq.s32.totalorder %s23, 1
      %p41 = por %p39, %p40
      %p42 = scmp.ne.s32.totalorder %s31, %s32
      %p43 = scmp.eq.s32.totalorder %s23, 0
      %p44 = por %p42, %p43
      %p45 = scmp.ne.s32.totalorder %s31, %s32
      %p46 = scmp.eq.s32.totalorder %s24, 1
      %p47 = por %p45, %p46
      %p49 = scmp.ne.s32.totalorder %s32, %s48
      %p50 = scmp.eq.s32.totalorder %s24, 0
      %p51 = por %p49, %p50
      %s53 = sadd.s32 %s52, 1
      %p56 = scmp.eq.s32.totalorder %s18, 1
      %p57 = scmp.ne.s32.totalorder %s52, %s54
      %p58 = scmp.eq.s32.totalorder %s18, 0
      %p59 = por %p57, %p58
      %p60 = scmp.ne.s32.totalorder %s52, %s54
      %p61 = scmp.eq.s32.totalorder %s23, 1
      %p62 = por %p60, %p61
      %p63 = scmp.ne.s32.totalorder %s54, %s55
      %p64 = scmp.eq.s32.totalorder %s23, 0
      %p65 = por %p63, %p64
      %p66 = scmp.ne.s32.totalorder %s54, %s55
      %p67 = scmp.eq.s32.totalorder %s24, 1
      %p68 = por %p66, %p67
      %p70 = scmp.ne.s32.totalorder %s55, %s69
      %p71 = scmp.eq.s32.totalorder %s24, 0
      %p72 = por %p70, %p71
      %s74 = sadd.s32 %s73, 1
      %p77 = scmp.eq.s32.totalorder %s18, 1
      %p78 = scmp.ne.s32.totalorder %s73, %s75
      %p79 = scmp.eq.s32.totalorder %s18, 0
      %p80 = por %p78, %p79
      %p81 = scmp.ne.s32.totalorder %s73, %s75
      %p82 = scmp.eq.s32.totalorder %s23, 1
      %p83 = por %p81, %p82
      %p84 = scmp.ne.s32.totalorder %s75, %s76
      %p85 = scmp.eq.s32.totalorder %s23, 0
      %p86 = por %p84, %p85
      %p87 = scmp.ne.s32.totalorder %s75, %s76
      %p88 = scmp.eq.s32.totalorder %s24, 1
      %p89 = por %p87, %p88
      %p91 = scmp.ne.s32.totalorder %s76, %s90
      %p92 = scmp.eq.s32.totalorder %s24, 0
      %p93 = por %p91, %p92
      %s95 = sadd.s32 %s94, 1
      %p98 = scmp.eq.s32.totalorder %s18, 1
      %p99 = scmp.ne.s32.totalorder %s94, %s96
      %p100 = scmp.eq.s32.totalorder %s18, 0
      %p101 = por %p99, %p100
      %p102 = scmp.ne.s32.totalorder %s94, %s96
      %p103 = scmp.eq.s32.totalorder %s23, 1
      %p104 = por %p102, %p103
      %p105 = scmp.ne.s32.totalorder %s96, %s97
      %p106 = scmp.eq.s32.totalorder %s23, 0
      %p107 = por %p105, %p106
      %p108 = scmp.ne.s32.totalorder %s96, %s97
      %p109 = scmp.eq.s32.totalorder %s24, 1
      %p110 = por %p108, %p109
      %p112 = scmp.ne.s32.totalorder %s97, %s111
      %p113 = scmp.eq.s32.totalorder %s24, 0
      %p114 = por %p112, %p113
      %s116 = sadd.s32 %s115, 1
      %p119 = scmp.eq.s32.totalorder %s18, 1
      %p120 = scmp.ne.s32.totalorder %s115, %s117
      %p121 = scmp.eq.s32.totalorder %s18, 0
      %p122 = por %p120, %p121
      %p123 = scmp.ne.s32.totalorder %s115, %s117
      %p124 = scmp.eq.s32.totalorder %s23, 1
      %p125 = por %p123, %p124
      %p126 = scmp.ne.s32.totalorder %s117, %s118
      %p127 = scmp.eq.s32.totalorder %s23, 0
      %p128 = por %p126, %p127
      %p129 = scmp.ne.s32.totalorder %s117, %s118
      %p130 = scmp.eq.s32.totalorder %s24, 1
      %p131 = por %p129, %p130
      %p133 = scmp.ne.s32.totalorder %s118, %s132
      %p134 = scmp.eq.s32.totalorder %s24, 0
      %p135 = por %p133, %p134
      %s136 = ssub.s32 %s18, %s25
      %p137 = scmp.eq.s32.totalorder %s136, 0
      %s139 = sadd.s32 %s138, 1
      %s140 = scalar_select %p137, %s138, %s139
      %p143 = pneg %p137
      %p144 = scmp.eq.s32.totalorder %s18, 1
      %p145 = por %p143, %p144
      %p146 = scmp.ne.s32.totalorder %s138, %s141
      %p147 = scmp.eq.s32.totalorder %s18, 0
      %p148 = por %p146, %p147
      %p149 = scmp.ne.s32.totalorder %s138, %s141
      %p150 = scmp.eq.s32.totalorder %s23, 1
      %p151 = por %p149, %p150
      %p152 = scmp.ne.s32.totalorder %s141, %s142
      %p153 = scmp.eq.s32.totalorder %s23, 0
      %p154 = por %p152, %p153
      %p155 = scmp.ne.s32.totalorder %s141, %s142
      %p156 = scmp.eq.s32.totalorder %s24, 1
      %p157 = por %p155, %p156
      %p159 = scmp.ne.s32.totalorder %s142, %s158
      %p160 = scmp.eq.s32.totalorder %s24, 0
      %p161 = por %p159, %p160
      %p162 = scmp.le.s32.totalorder 1, %s18
      %p163 = scmp.lt.s32.totalorder %s18, 3
      %p164 = pnand %p162, %p163
      %p165 = pneg %p164
      // Predicated region
      $region9: #{tpu_custom_call.1} parent=5 // pred_check
        _
      $region10: #{tpu_custom_call.1} parent=5 // pred_check_branch
        %167 = sbr.rel (%p164) target = $region12
      $region11: #{tpu_custom_call.1} parent=5 // pred_region
        %s168 = ssub.s32 %s18, 1
        // Predicated region
        $region13: #{tpu_custom_call.1} parent=11 // pred_check
          %p169 = pneg %p65
        $region14: #{tpu_custom_call.1} parent=11 // pred_check_branch
          %171 = sbr.rel (%p169) target = $region16
        $region15: #{tpu_custom_call.1} parent=11 // pred_region
          _
        $region16: #{tpu_custom_call.1} parent=11 // pred_fallthru
          _
        // Predicated region
        $region17: #{tpu_custom_call.1} parent=11 // pred_check
          %p172 = pneg %p86
        $region18: #{tpu_custom_call.1} parent=11 // pred_check_branch
          %174 = sbr.rel (%p172) target = $region20
        $region19: #{tpu_custom_call.1} parent=11 // pred_region
          _
        $region20: #{tpu_custom_call.1} parent=11 // pred_fallthru
          _
        // Predicated region
        $region21: #{tpu_custom_call.1} parent=11 // pred_check
          %p175 = pneg %p107
        $region22: #{tpu_custom_call.1} parent=11 // pred_check_branch
          %177 = sbr.rel (%p175) target = $region24
        $region23: #{tpu_custom_call.1} parent=11 // pred_region
          _
        $region24: #{tpu_custom_call.1} parent=11 // pred_fallthru
          _
        // Predicated region
        $region25: #{tpu_custom_call.1} parent=11 // pred_check
          %p178 = pneg %p128
        $region26: #{tpu_custom_call.1} parent=11 // pred_check_branch
          %180 = sbr.rel (%p178) target = $region28
        $region27: #{tpu_custom_call.1} parent=11 // pred_region
          %s182 = ssub.s32 32, 32
          %183 = vsyncadd [#allocation7], %s182
          %s185 = sshll.u32 %s4, 4
          %s186 = int_to_ptr.vmem [resolvable:$true] %s185
          %188 = dma.vmem_to_smem %s186, 32, [#allocation8], [#allocation7]
        $region28: #{tpu_custom_call.1} parent=11 // pred_fallthru
          _
      $region12: #{tpu_custom_call.1} parent=5 // pred_fallthru
        _
      %p189 = scmp.lt.s32.totalorder %s18, 2
      // Predicated region
      $region29: #{tpu_custom_call.1} parent=5 // pred_check
        %p190 = pneg %p189
      $region30: #{tpu_custom_call.1} parent=5 // pred_check_branch
        %192 = sbr.rel (%p190) target = $region32
      $region31: #{tpu_custom_call.1} parent=5 // pred_region
        // Predicated region
        $region33: #{tpu_custom_call.1} parent=31 // pred_check
          %p193 = pneg %p38
        $region34: #{tpu_custom_call.1} parent=31 // pred_check_branch
          %195 = sbr.rel (%p193) target = $region36
        $region35: #{tpu_custom_call.1} parent=31 // pred_region
          %s196 = sand.u32 %s28, 1
          %s197 = scalar_lea.sflag [#allocation5], %s196
          %s198 = sand.u32 %s28, 1
          %s199 = smul.addr %s198, 256
          %s200 = scalar_lea.vmem [#allocation4], %s199
          %s202 = ssub.s32 4096, 4096
          %203 = vsyncadd %s197, %s202
          %s204 = smul.addr %s18, 32
          %s205 = smul.addr %s204, 128
          %s206 = scalar_lea.hbm %s0, %s205
          %s207 = sshll.u32 %s200, 4
          %s208 = int_to_ptr.vmem [resolvable:$true] %s207
          %213 = dma.hbm_to_vmem [thread:$0]  %s206, 4096, %s208, %s197, 1024, 1024, 64
        $region36: #{tpu_custom_call.1} parent=31 // pred_fallthru
          _
      $region32: #{tpu_custom_call.1} parent=5 // pred_fallthru
        _
      %p214 = scmp.le.s32.totalorder 1, %s18
      %p215 = scmp.lt.s32.totalorder %s18, 3
      %p216 = pnand %p214, %p215
      %p217 = pneg %p216
      // Predicated region
      $region37: #{tpu_custom_call.1} parent=5 // pred_check
        _
      $region38: #{tpu_custom_call.1} parent=5 // pred_check_branch
        %219 = sbr.rel (%p216) target = $region40
      $region39: #{tpu_custom_call.1} parent=5 // pred_region
        %s220 = ssub.s32 %s18, 1
        %s221 = sand.u32 %s31, 1
        %s222 = scalar_lea.sflag [#allocation5], %s221
        %s223 = sand.u32 %s31, 1
        %s224 = smul.addr %s223, 256
        %s225 = scalar_lea.vmem [#allocation4], %s224
        // Predicated region
        $region41: #{tpu_custom_call.1} parent=39 // pred_check
          %p226 = pneg %p44
        $region42: #{tpu_custom_call.1} parent=39 // pred_check_branch
          %228 = sbr.rel (%p226) target = $region44
        $region43: #{tpu_custom_call.1} parent=39 // pred_region
          %229 = dma.done %s222, 4096
        $region44: #{tpu_custom_call.1} parent=39 // pred_fallthru
          _
        // Predicated region
        $region45: #{tpu_custom_call.1} parent=39 // pred_check
          %p230 = pneg %p128
        $region46: #{tpu_custom_call.1} parent=39 // pred_check_branch
          %232 = sbr.rel (%p230) target = $region48
        $region47: #{tpu_custom_call.1} parent=39 // pred_region
          %233 = dma.done [#allocation7], 32
        $region48: #{tpu_custom_call.1} parent=39 // pred_fallthru
          _
        %234 = sfence
        %s235 = sand.u32 %s31, 1
        %s236 = scalar_lea.sflag [#allocation5], %s235
        %s237 = sand.u32 %s31, 1
        %s238 = smul.addr %s237, 256
        %s239 = scalar_lea.vmem [#allocation4], %s238
        %p240 = pneg %p44
        %p241 = pneg %p41
        %p242 = pneg %p65
        %p243 = pneg %p62
        %p244 = pneg %p86
        %p245 = pneg %p83
        %p246 = pneg %p107
        %p247 = pneg %p104
        %p248 = pneg %p128
        %p249 = pneg %p125
        %p250 = pneg %p154
        %p251 = pneg %p151
        %s252 = sand.u32 %s141, 1
        %s253 = scalar_lea.sflag [#allocation6], %s252
        %s254 = sand.u32 %s141, 1
        %s255 = smul.addr %s254, 256
        %s256 = scalar_lea.vmem [#allocation9], %s255
        loop: start=0, step=1, limit=4
        $region49: #{tpu_custom_call.1} parent=39 // loop_pre_header
          _
        $region50: #{tpu_custom_call.1} parent=39 // loop_header
          %s258 = sphi 0, %s262
          %p259 = scmp.ge.s32.totalorder %s258, 4
        $region51: #{tpu_custom_call.1} parent=39 // loop_header_branch
          %261 = sbr.rel (%p259) target = $region55
        $region52: #{tpu_custom_call.1} parent=39 // loop_body
          %s263 = smul.u32 %s258, 8
          %s264 = sshra.s32 %s263, 3
          %s265 = sand.u32 %s263, 7
          %s266 = smul.u32 %s264, 8
          %s267 = smul.addr %s266, 8
          %s268 = scalar_lea.vmem %s225, %s267 [#allocation4]
          %v269 = vld [vmem:[%s268] sm:$0xff]
          %v270 = vld [vmem:[%s268 + $0x8] sm:$0xff]
          %v271 = vld [vmem:[%s268 + $0x10] sm:$0xff]
          %v272 = vld [vmem:[%s268 + $0x18] sm:$0xff]
          %v273 = vld [vmem:[%s268 + $0x20] sm:$0xff]
          %v274 = vld [vmem:[%s268 + $0x28] sm:$0xff]
          %v275 = vld [vmem:[%s268 + $0x30] sm:$0xff]
          %v276 = vld [vmem:[%s268 + $0x38] sm:$0xff]
          %v277 = vadd.f32 %v269, %v270
          %v278 = vadd.f32 %v277, %v271
          %v279 = vadd.f32 %v278, %v272
          %v280 = vadd.f32 %v279, %v273
          %v281 = vadd.f32 %v280, %v274
          %v282 = vadd.f32 %v281, %v275
          %v283 = vadd.f32 %v282, %v276
          %284 = vadd.xlane.f32.xlu0 %v283
          %v285 = vpop.xlane.xlu0 %284
          %v286 = vmul.f32 %v285, 0.0009765625
          %v287 = vmax.f32 %v269, %v273
          %v288 = vmax.f32 %v270, %v274
          %v289 = vmax.f32 %v271, %v275
          %v290 = vmax.f32 %v272, %v276
          %v291 = vmax.f32 %v287, %v288
          %v292 = vmax.f32 %v289, %v290
          %v293 = vmax.f32 %v291, %v292
          %294 = vmax.xlane.f32.xlu0 %v293
          %v295 = vpop.xlane.xlu0 %294
          %vm296 = vcmask 7168
          %v297 = vsel %vm296, %v286, %v295
          %s298 = scalar_lea.vmem [#allocation2], %s263
          %vm299 = vcmask 15360
          %300 = vst.msk [vmem:[%s298] sm:$0xff] %vm299, %v297
        $region53: #{tpu_custom_call.1} parent=39 // loop_footer
          %s262 = sadd.s32 1, %s258
        $region54: #{tpu_custom_call.1} parent=39 // loop_footer_branch
          %257 = sbr.rel target = $region50
        $region55: #{tpu_custom_call.1} parent=39 // loop_exit
          _
        %v301 = vld [vmem:[#allocation2] sm:$0xff]
        %v302 = vld [vmem:[#allocation2 + $0x8] sm:$0xff]
        %v303 = vld [vmem:[#allocation2 + $0x10] sm:$0xff]
        %v304 = vld [vmem:[#allocation2 + $0x18] sm:$0xff]
        %v305 = vld [vmem:[%s1] sm:$0x3]
        %v306 = vld [vmem:[%s2] sm:$0xff]
        %v307 = vld [vmem:[%s2 + $0x8] sm:$0xff]
        %v308 = vld [vmem:[%s2 + $0x10] sm:$0xff]
        %v309 = vld [vmem:[%s2 + $0x18] sm:$0xff]
        %vm310 = vcmask 261120
        %v312 = vsel %vm310, %v305, 0
        %314 = vmatprep.subr.mxu0 0.0
        %v315 = vand.u32 %v301, 4294901760
        %316 = vmatpush1.msra.mxu0 %v315
        %317 = vmatprep.subr.mxu0 0.0
        %v318 = vand.u32 %v302, 4294901760
        %319 = vmatpush1.msra.mxu0 %v318
        %320 = vmatprep.subr.mxu0 0.0
        %v321 = vand.u32 %v303, 4294901760
        %322 = vmatpush1.msra.mxu0 %v321
        %323 = vmatprep.subr.mxu0 0.0
        %v324 = vand.u32 %v304, 4294901760
        %325 = vmatpush1.msra.mxu0 %v324
        %326 = vmatprep.subr.mxu0 0.0
        %327 = vmatpush1.msra.mxu0 0.0
        %328 = vmatprep.subr.mxu0 0.0
        %329 = vmatpush1.msra.mxu0 0.0
        %330 = vmatprep.subr.mxu0 0.0
        %331 = vmatpush1.msra.mxu0 0.0
        %332 = vmatprep.subr.mxu0 0.0
        %333 = vmatpush1.msra.mxu0 0.0
        %334 = vmatprep.subr.mxu0 0.0
        %335 = vmatpush1.msra.mxu0 0.0
        %336 = vmatprep.subr.mxu0 0.0
        %337 = vmatpush1.msra.mxu0 0.0
        %338 = vmatprep.subr.mxu0 0.0
        %339 = vmatpush1.msra.mxu0 0.0
        %340 = vmatprep.subr.mxu0 0.0
        %341 = vmatpush1.msra.mxu0 0.0
        %342 = vmatprep.subr.mxu0 0.0
        %343 = vmatpush1.msra.mxu0 0.0
        %344 = vmatprep.subr.mxu0 0.0
        %345 = vmatpush1.msra.mxu0 0.0
        %346 = vmatprep.subr.mxu0 0.0
        %347 = vmatpush1.msra.mxu0 0.0
        %348 = vmatprep.subr.mxu0 0.0
        %349 = vmatpush1.msra.mxu0 0.0
        %350 = vmatprep.subr.mxu0 0.0
        %351 = vmatpush1.msra.mxu0 0.0
        %352 = vmatprep.subr.mxu0 0.0
        %353 = vmatpush1.msra.mxu0 0.0
        %354 = vmatprep.subr.mxu0 0.0
        %355 = vmatpush1.msra.mxu0 0.0
        %356 = vmatprep.subr.mxu0 0.0
        %357 = vmatpush1.msra.mxu0 0.0
        %358 = vmatprep.subr.mxu0 0.0
        %359 = vmatpush1.msra.mxu0 0.0
        %360 = vmatprep.subr.mxu0 0.0
        %361 = vmatpush1.msra.mxu0 0.0
        %362 = vmatprep.subr.mxu0 0.0
        %363 = vmatpush1.msra.mxu0 0.0
        %364 = vmatprep.subr.mxu0 0.0
        %365 = vmatpush1.msra.mxu0 0.0
        %366 = vmatprep.subr.mxu0 0.0
        %367 = vmatpush1.msra.mxu0 0.0
        %368 = vmatprep.subr.mxu0 0.0
        %369 = vmatpush1.msra.mxu0 0.0
        %370 = vmatprep.subr.mxu0 0.0
        %371 = vmatpush1.msra.mxu0 0.0
        %372 = vmatprep.subr.mxu0 0.0
        %373 = vmatpush1.msra.mxu0 0.0
        %374 = vmatprep.subr.mxu0 0.0
        %375 = vmatpush1.msra.mxu0 0.0
        %376 = vmatprep.subr.mxu0 0.0
        %377 = vmatpush1.msra.mxu0 0.0
        %378 = vmatprep.subr.mxu0 0.0
        %379 = vmatpush1.msra.mxu0 0.0
        %380 = vmatprep.subr.mxu0 0.0
        %381 = vmatpush1.msra.mxu0 0.0
        %382 = vmatprep.mubr.f32.mxu0 0.0
        %v383 = vand.u32 %v312, 4294901760
        %v384 = vsub.f32 %v312, %v383
        %v385 = vand.u32 %v384, 4294901760
        %v386 = vsub.f32 %v384, %v385
        %v387 = vand.u32 %v386, 4294901760
        %388 = vmatmul.mubr.f32.gmra.mrb[0].mxu0 %v387
        %v389 = vpop.f32.mrb[0].mxu0
        %v390 = vadd.f32 0.0, %v389
        %v391 = vpop.f32.mrb[0].mxu0
        %392 = vdwg.mxu0
        %393 = vmatprep.subr.mxu0 0.0
        %v394 = vand.u32 %v301, 4294901760
        %v395 = vsub.f32 %v301, %v394
        %v396 = vand.u32 %v395, 4294901760
        %v397 = vsub.f32 %v395, %v396
        %v398 = vand.u32 %v397, 4294901760
        %399 = vmatpush1.msra.mxu0 %v398
        %400 = vmatprep.subr.mxu0 0.0
        %v401 = vand.u32 %v302, 4294901760
        %v402 = vsub.f32 %v302, %v401
        %v403 = vand.u32 %v402, 4294901760
        %v404 = vsub.f32 %v402, %v403
        %v405 = vand.u32 %v404, 4294901760
        %406 = vmatpush1.msra.mxu0 %v405
        %407 = vmatprep.subr.mxu0 0.0
        %v408 = vand.u32 %v303, 4294901760
        %v409 = vsub.f32 %v303, %v408
        %v410 = vand.u32 %v409, 4294901760
        %v411 = vsub.f32 %v409, %v410
        %v412 = vand.u32 %v411, 4294901760
        %413 = vmatpush1.msra.mxu0 %v412
        %414 = vmatprep.subr.mxu0 0.0
        %v415 = vand.u32 %v304, 4294901760
        %v416 = vsub.f32 %v304, %v415
        %v417 = vand.u32 %v416, 4294901760
        %v418 = vsub.f32 %v416, %v417
        %v419 = vand.u32 %v418, 4294901760
        %420 = vmatpush1.msra.mxu0 %v419
        %421 = vmatprep.subr.mxu0 0.0
        %422 = vmatpush1.msra.mxu0 0.0
        %423 = vmatprep.subr.mxu0 0.0
        %424 = vmatpush1.msra.mxu0 0.0
        %425 = vmatprep.subr.mxu0 0.0
        %426 = vmatpush1.msra.mxu0 0.0
        %427 = vmatprep.subr.mxu0 0.0
        %428 = vmatpush1.msra.mxu0 0.0
        %429 = vmatprep.subr.mxu0 0.0
        %430 = vmatpush1.msra.mxu0 0.0
        %431 = vmatprep.subr.mxu0 0.0
        %432 = vmatpush1.msra.mxu0 0.0
        %433 = vmatprep.subr.mxu0 0.0
        %434 = vmatpush1.msra.mxu0 0.0
        %435 = vmatprep.subr.mxu0 0.0
        %436 = vmatpush1.msra.mxu0 0.0
        %437 = vmatprep.subr.mxu0 0.0
        %438 = vmatpush1.msra.mxu0 0.0
        %439 = vmatprep.subr.mxu0 0.0
        %440 = vmatpush1.msra.mxu0 0.0
        %441 = vmatprep.subr.mxu0 0.0
        %442 = vmatpush1.msra.mxu0 0.0
        %443 = vmatprep.subr.mxu0 0.0
        %444 = vmatpush1.msra.mxu0 0.0
        %445 = vmatprep.subr.mxu0 0.0
        %446 = vmatpush1.msra.mxu0 0.0
        %447 = vmatprep.subr.mxu0 0.0
        %448 = vmatpush1.msra.mxu0 0.0
        %449 = vmatprep.subr.mxu0 0.0
        %450 = vmatpush1.msra.mxu0 0.0
        %451 = vmatprep.subr.mxu0 0.0
        %452 = vmatpush1.msra.mxu0 0.0
        %453 = vmatprep.subr.mxu0 0.0
        %454 = vmatpush1.msra.mxu0 0.0
        %455 = vmatprep.subr.mxu0 0.0
        %456 = vmatpush1.msra.mxu0 0.0
        %457 = vmatprep.subr.mxu0 0.0
        %458 = vmatpush1.msra.mxu0 0.0
        %459 = vmatprep.subr.mxu0 0.0
        %460 = vmatpush1.msra.mxu0 0.0
        %461 = vmatprep.subr.mxu0 0.0
        %462 = vmatpush1.msra.mxu0 0.0
        %463 = vmatprep.subr.mxu0 0.0
        %464 = vmatpush1.msra.mxu0 0.0
        %465 = vmatprep.subr.mxu0 0.0
        %466 = vmatpush1.msra.mxu0 0.0
        %467 = vmatprep.subr.mxu0 0.0
        %468 = vmatpush1.msra.mxu0 0.0
        %469 = vmatprep.subr.mxu0 0.0
        %470 = vmatpush1.msra.mxu0 0.0
        %471 = vmatprep.subr.mxu0 0.0
        %472 = vmatpush1.msra.mxu0 0.0
        %473 = vmatprep.subr.mxu0 0.0
        %474 = vmatpush1.msra.mxu0 0.0
        %475 = vmatprep.subr.mxu0 0.0
        %476 = vmatpush1.msra.mxu0 0.0
        %477 = vmatprep.mubr.f32.mxu0 0.0
        %v478 = vand.u32 %v312, 4294901760
        %479 = vmatmul.mubr.f32.gmra.mrb[0].mxu0 %v478
        %v480 = vpop.f32.mrb[0].mxu0
        %v481 = vadd.f32 %v390, %v480
        %v482 = vpop.f32.mrb[0].mxu0
        %483 = vdwg.mxu0
        %484 = vmatprep.subr.mxu0 0.0
        %v485 = vand.u32 %v301, 4294901760
        %v486 = vsub.f32 %v301, %v485
        %487 = vmatpush1.msra.mxu0 %v486
        %488 = vmatprep.subr.mxu0 0.0
        %v489 = vand.u32 %v302, 4294901760
        %v490 = vsub.f32 %v302, %v489
        %491 = vmatpush1.msra.mxu0 %v490
        %492 = vmatprep.subr.mxu0 0.0
        %v493 = vand.u32 %v303, 4294901760
        %v494 = vsub.f32 %v303, %v493
        %495 = vmatpush1.msra.mxu0 %v494
        %496 = vmatprep.subr.mxu0 0.0
        %v497 = vand.u32 %v304, 4294901760
        %v498 = vsub.f32 %v304, %v497
        %499 = vmatpush1.msra.mxu0 %v498
        %500 = vmatprep.subr.mxu0 0.0
        %501 = vmatpush1.msra.mxu0 0.0
        %502 = vmatprep.subr.mxu0 0.0
        %503 = vmatpush1.msra.mxu0 0.0
        %504 = vmatprep.subr.mxu0 0.0
        %505 = vmatpush1.msra.mxu0 0.0
        %506 = vmatprep.subr.mxu0 0.0
        %507 = vmatpush1.msra.mxu0 0.0
        %508 = vmatprep.subr.mxu0 0.0
        %509 = vmatpush1.msra.mxu0 0.0
        %510 = vmatprep.subr.mxu0 0.0
        %511 = vmatpush1.msra.mxu0 0.0
        %512 = vmatprep.subr.mxu0 0.0
        %513 = vmatpush1.msra.mxu0 0.0
        %514 = vmatprep.subr.mxu0 0.0
        %515 = vmatpush1.msra.mxu0 0.0
        %516 = vmatprep.subr.mxu0 0.0
        %517 = vmatpush1.msra.mxu0 0.0
        %518 = vmatprep.subr.mxu0 0.0
        %519 = vmatpush1.msra.mxu0 0.0
        %520 = vmatprep.subr.mxu0 0.0
        %521 = vmatpush1.msra.mxu0 0.0
        %522 = vmatprep.subr.mxu0 0.0
        %523 = vmatpush1.msra.mxu0 0.0
        %524 = vmatprep.subr.mxu0 0.0
        %525 = vmatpush1.msra.mxu0 0.0
        %526 = vmatprep.subr.mxu0 0.0
        %527 = vmatpush1.msra.mxu0 0.0
        %528 = vmatprep.subr.mxu0 0.0
        %529 = vmatpush1.msra.mxu0 0.0
        %530 = vmatprep.subr.mxu0 0.0
        %531 = vmatpush1.msra.mxu0 0.0
        %532 = vmatprep.subr.mxu0 0.0
        %533 = vmatpush1.msra.mxu0 0.0
        %534 = vmatprep.subr.mxu0 0.0
        %535 = vmatpush1.msra.mxu0 0.0
        %536 = vmatprep.subr.mxu0 0.0
        %537 = vmatpush1.msra.mxu0 0.0
        %538 = vmatprep.subr.mxu0 0.0
        %539 = vmatpush1.msra.mxu0 0.0
        %540 = vmatprep.subr.mxu0 0.0
        %541 = vmatpush1.msra.mxu0 0.0
        %542 = vmatprep.subr.mxu0 0.0
        %543 = vmatpush1.msra.mxu0 0.0
        %544 = vmatprep.subr.mxu0 0.0
        %545 = vmatpush1.msra.mxu0 0.0
        %546 = vmatprep.subr.mxu0 0.0
        %547 = vmatpush1.msra.mxu0 0.0
        %548 = vmatprep.subr.mxu0 0.0
        %549 = vmatpush1.msra.mxu0 0.0
        %550 = vmatprep.subr.mxu0 0.0
        %551 = vmatpush1.msra.mxu0 0.0
        %552 = vmatprep.subr.mxu0 0.0
        %553 = vmatpush1.msra.mxu0 0.0
        %554 = vmatprep.subr.mxu0 0.0
        %555 = vmatpush1.msra.mxu0 0.0
        %556 = vmatprep.mubr.f32.mxu0 0.0
        %v557 = vand.u32 %v312, 4294901760
        %v558 = vsub.f32 %v312, %v557
        %559 = vmatmul.mubr.f32.gmra.mrb[0].mxu0 %v558
        %v560 = vpop.f32.mrb[0].mxu0
        %v561 = vadd.f32 %v481, %v560
        %v562 = vpop.f32.mrb[0].mxu0
        %563 = vdwg.mxu0
        %564 = vmatprep.subr.mxu0 0.0
        %v565 = vand.u32 %v301, 4294901760
        %566 = vmatpush1.msra.mxu0 %v565
        %567 = vmatprep.subr.mxu0 0.0
        %v568 = vand.u32 %v302, 4294901760
        %569 = vmatpush1.msra.mxu0 %v568
        %570 = vmatprep.subr.mxu0 0.0
        %v571 = vand.u32 %v303, 4294901760
        %572 = vmatpush1.msra.mxu0 %v571
        %573 = vmatprep.subr.mxu0 0.0
        %v574 = vand.u32 %v304, 4294901760
        %575 = vmatpush1.msra.mxu0 %v574
        %576 = vmatprep.subr.mxu0 0.0
        %577 = vmatpush1.msra.mxu0 0.0
        %578 = vmatprep.subr.mxu0 0.0
        %579 = vmatpush1.msra.mxu0 0.0
        %580 = vmatprep.subr.mxu0 0.0
        %581 = vmatpush1.msra.mxu0 0.0
        %582 = vmatprep.subr.mxu0 0.0
        %583 = vmatpush1.msra.mxu0 0.0
        %584 = vmatprep.subr.mxu0 0.0
        %585 = vmatpush1.msra.mxu0 0.0
        %586 = vmatprep.subr.mxu0 0.0
        %587 = vmatpush1.msra.mxu0 0.0
        %588 = vmatprep.subr.mxu0 0.0
        %589 = vmatpush1.msra.mxu0 0.0
        %590 = vmatprep.subr.mxu0 0.0
        %591 = vmatpush1.msra.mxu0 0.0
        %592 = vmatprep.subr.mxu0 0.0
        %593 = vmatpush1.msra.mxu0 0.0
        %594 = vmatprep.subr.mxu0 0.0
        %595 = vmatpush1.msra.mxu0 0.0
        %596 = vmatprep.subr.mxu0 0.0
        %597 = vmatpush1.msra.mxu0 0.0
        %598 = vmatprep.subr.mxu0 0.0
        %599 = vmatpush1.msra.mxu0 0.0
        %600 = vmatprep.subr.mxu0 0.0
        %601 = vmatpush1.msra.mxu0 0.0
        %602 = vmatprep.subr.mxu0 0.0
        %603 = vmatpush1.msra.mxu0 0.0
        %604 = vmatprep.subr.mxu0 0.0
        %605 = vmatpush1.msra.mxu0 0.0
        %606 = vmatprep.subr.mxu0 0.0
        %607 = vmatpush1.msra.mxu0 0.0
        %608 = vmatprep.subr.mxu0 0.0
        %609 = vmatpush1.msra.mxu0 0.0
        %610 = vmatprep.subr.mxu0 0.0
        %611 = vmatpush1.msra.mxu0 0.0
        %612 = vmatprep.subr.mxu0 0.0
        %613 = vmatpush1.msra.mxu0 0.0
        %614 = vmatprep.subr.mxu0 0.0
        %615 = vmatpush1.msra.mxu0 0.0
        %616 = vmatprep.subr.mxu0 0.0
        %617 = vmatpush1.msra.mxu0 0.0
        %618 = vmatprep.subr.mxu0 0.0
        %619 = vmatpush1.msra.mxu0 0.0
        %620 = vmatprep.subr.mxu0 0.0
        %621 = vmatpush1.msra.mxu0 0.0
        %622 = vmatprep.subr.mxu0 0.0
        %623 = vmatpush1.msra.mxu0 0.0
        %624 = vmatprep.subr.mxu0 0.0
        %625 = vmatpush1.msra.mxu0 0.0
        %626 = vmatprep.subr.mxu0 0.0
        %627 = vmatpush1.msra.mxu0 0.0
        %628 = vmatprep.subr.mxu0 0.0
        %629 = vmatpush1.msra.mxu0 0.0
        %630 = vmatprep.subr.mxu0 0.0
        %631 = vmatpush1.msra.mxu0 0.0
        %632 = vmatprep.mubr.f32.mxu0 0.0
        %v633 = vand.u32 %v312, 4294901760
        %v634 = vsub.f32 %v312, %v633
        %v635 = vand.u32 %v634, 4294901760
        %636 = vmatmul.mubr.f32.gmra.mrb[0].mxu0 %v635
        %v637 = vpop.f32.mrb[0].mxu0
        %v638 = vadd.f32 %v561, %v637
        %v639 = vpop.f32.mrb[0].mxu0
        %640 = vdwg.mxu0
        %641 = vmatprep.subr.mxu0 0.0
        %v642 = vand.u32 %v301, 4294901760
        %v643 = vsub.f32 %v301, %v642
        %v644 = vand.u32 %v643, 4294901760
        %645 = vmatpush1.msra.mxu0 %v644
        %646 = vmatprep.subr.mxu0 0.0
        %v647 = vand.u32 %v302, 4294901760
        %v648 = vsub.f32 %v302, %v647
        %v649 = vand.u32 %v648, 4294901760
        %650 = vmatpush1.msra.mxu0 %v649
        %651 = vmatprep.subr.mxu0 0.0
        %v652 = vand.u32 %v303, 4294901760
        %v653 = vsub.f32 %v303, %v652
        %v654 = vand.u32 %v653, 4294901760
        %655 = vmatpush1.msra.mxu0 %v654
        %656 = vmatprep.subr.mxu0 0.0
        %v657 = vand.u32 %v304, 4294901760
        %v658 = vsub.f32 %v304, %v657
        %v659 = vand.u32 %v658, 4294901760
        %660 = vmatpush1.msra.mxu0 %v659
        %661 = vmatprep.subr.mxu0 0.0
        %662 = vmatpush1.msra.mxu0 0.0
        %663 = vmatprep.subr.mxu0 0.0
        %664 = vmatpush1.msra.mxu0 0.0
        %665 = vmatprep.subr.mxu0 0.0
        %666 = vmatpush1.msra.mxu0 0.0
        %667 = vmatprep.subr.mxu0 0.0
        %668 = vmatpush1.msra.mxu0 0.0
        %669 = vmatprep.subr.mxu0 0.0
        %670 = vmatpush1.msra.mxu0 0.0
        %671 = vmatprep.subr.mxu0 0.0
        %672 = vmatpush1.msra.mxu0 0.0
        %673 = vmatprep.subr.mxu0 0.0
        %674 = vmatpush1.msra.mxu0 0.0
        %675 = vmatprep.subr.mxu0 0.0
        %676 = vmatpush1.msra.mxu0 0.0
        %677 = vmatprep.subr.mxu0 0.0
        %678 = vmatpush1.msra.mxu0 0.0
        %679 = vmatprep.subr.mxu0 0.0
        %680 = vmatpush1.msra.mxu0 0.0
        %681 = vmatprep.subr.mxu0 0.0
        %682 = vmatpush1.msra.mxu0 0.0
        %683 = vmatprep.subr.mxu0 0.0
        %684 = vmatpush1.msra.mxu0 0.0
        %685 = vmatprep.subr.mxu0 0.0
        %686 = vmatpush1.msra.mxu0 0.0
        %687 = vmatprep.subr.mxu0 0.0
        %688 = vmatpush1.msra.mxu0 0.0
        %689 = vmatprep.subr.mxu0 0.0
        %690 = vmatpush1.msra.mxu0 0.0
        %691 = vmatprep.subr.mxu0 0.0
        %692 = vmatpush1.msra.mxu0 0.0
        %693 = vmatprep.subr.mxu0 0.0
        %694 = vmatpush1.msra.mxu0 0.0
        %695 = vmatprep.subr.mxu0 0.0
        %696 = vmatpush1.msra.mxu0 0.0
        %697 = vmatprep.subr.mxu0 0.0
        %698 = vmatpush1.msra.mxu0 0.0
        %699 = vmatprep.subr.mxu0 0.0
        %700 = vmatpush1.msra.mxu0 0.0
        %701 = vmatprep.subr.mxu0 0.0
        %702 = vmatpush1.msra.mxu0 0.0
        %703 = vmatprep.subr.mxu0 0.0
        %704 = vmatpush1.msra.mxu0 0.0
        %705 = vmatprep.subr.mxu0 0.0
        %706 = vmatpush1.msra.mxu0 0.0
        %707 = vmatprep.subr.mxu0 0.0
        %708 = vmatpush1.msra.mxu0 0.0
        %709 = vmatprep.subr.mxu0 0.0
        %710 = vmatpush1.msra.mxu0 0.0
        %711 = vmatprep.subr.mxu0 0.0
        %712 = vmatpush1.msra.mxu0 0.0
        %713 = vmatprep.subr.mxu0 0.0
        %714 = vmatpush1.msra.mxu0 0.0
        %715 = vmatprep.subr.mxu0 0.0
        %716 = vmatpush1.msra.mxu0 0.0
        %717 = vmatprep.mubr.f32.mxu0 0.0
        %v718 = vand.u32 %v312, 4294901760
        %719 = vmatmul.mubr.f32.gmra.mrb[0].mxu0 %v718
        %v720 = vpop.f32.mrb[0].mxu0
        %v721 = vadd.f32 %v638, %v720
        %v722 = vpop.f32.mrb[0].mxu0
        %723 = vdwg.mxu0
        %724 = vmatprep.subr.mxu0 0.0
        %v725 = vand.u32 %v301, 4294901760
        %726 = vmatpush1.msra.mxu0 %v725
        %727 = vmatprep.subr.mxu0 0.0
        %v728 = vand.u32 %v302, 4294901760
        %729 = vmatpush1.msra.mxu0 %v728
        %730 = vmatprep.subr.mxu0 0.0
        %v731 = vand.u32 %v303, 4294901760
        %732 = vmatpush1.msra.mxu0 %v731
        %733 = vmatprep.subr.mxu0 0.0
        %v734 = vand.u32 %v304, 4294901760
        %735 = vmatpush1.msra.mxu0 %v734
        %736 = vmatprep.subr.mxu0 0.0
        %737 = vmatpush1.msra.mxu0 0.0
        %738 = vmatprep.subr.mxu0 0.0
        %739 = vmatpush1.msra.mxu0 0.0
        %740 = vmatprep.subr.mxu0 0.0
        %741 = vmatpush1.msra.mxu0 0.0
        %742 = vmatprep.subr.mxu0 0.0
        %743 = vmatpush1.msra.mxu0 0.0
        %744 = vmatprep.subr.mxu0 0.0
        %745 = vmatpush1.msra.mxu0 0.0
        %746 = vmatprep.subr.mxu0 0.0
        %747 = vmatpush1.msra.mxu0 0.0
        %748 = vmatprep.subr.mxu0 0.0
        %749 = vmatpush1.msra.mxu0 0.0
        %750 = vmatprep.subr.mxu0 0.0
        %751 = vmatpush1.msra.mxu0 0.0
        %752 = vmatprep.subr.mxu0 0.0
        %753 = vmatpush1.msra.mxu0 0.0
        %754 = vmatprep.subr.mxu0 0.0
        %755 = vmatpush1.msra.mxu0 0.0
        %756 = vmatprep.subr.mxu0 0.0
        %757 = vmatpush1.msra.mxu0 0.0
        %758 = vmatprep.subr.mxu0 0.0
        %759 = vmatpush1.msra.mxu0 0.0
        %760 = vmatprep.subr.mxu0 0.0
        %761 = vmatpush1.msra.mxu0 0.0
        %762 = vmatprep.subr.mxu0 0.0
        %763 = vmatpush1.msra.mxu0 0.0
        %764 = vmatprep.subr.mxu0 0.0
        %765 = vmatpush1.msra.mxu0 0.0
        %766 = vmatprep.subr.mxu0 0.0
        %767 = vmatpush1.msra.mxu0 0.0
        %768 = vmatprep.subr.mxu0 0.0
        %769 = vmatpush1.msra.mxu0 0.0
        %770 = vmatprep.subr.mxu0 0.0
        %771 = vmatpush1.msra.mxu0 0.0
        %772 = vmatprep.subr.mxu0 0.0
        %773 = vmatpush1.msra.mxu0 0.0
        %774 = vmatprep.subr.mxu0 0.0
        %775 = vmatpush1.msra.mxu0 0.0
        %776 = vmatprep.subr.mxu0 0.0
        %777 = vmatpush1.msra.mxu0 0.0
        %778 = vmatprep.subr.mxu0 0.0
        %779 = vmatpush1.msra.mxu0 0.0
        %780 = vmatprep.subr.mxu0 0.0
        %781 = vmatpush1.msra.mxu0 0.0
        %782 = vmatprep.subr.mxu0 0.0
        %783 = vmatpush1.msra.mxu0 0.0
        %784 = vmatprep.subr.mxu0 0.0
        %785 = vmatpush1.msra.mxu0 0.0
        %786 = vmatprep.subr.mxu0 0.0
        %787 = vmatpush1.msra.mxu0 0.0
        %788 = vmatprep.subr.mxu0 0.0
        %789 = vmatpush1.msra.mxu0 0.0
        %790 = vmatprep.subr.mxu0 0.0
        %791 = vmatpush1.msra.mxu0 0.0
        %792 = vmatprep.mubr.f32.mxu0 0.0
        %v793 = vand.u32 %v312, 4294901760
        %794 = vmatmul.mubr.f32.gmra.mrb[0].mxu0 %v793
        %v795 = vpop.f32.mrb[0].mxu0
        %v796 = vadd.f32 %v721, %v795
        %v797 = vpop.f32.mrb[0].mxu0
        %798 = vdwg.mxu0
        %v799 = vmax.f32 %v796, 0.0
        %vm800 = vcmask 15360
        %v802 = vsel %vm800, %v306, 0
        %v805 = vsel %vm800, %v307, 0
        %v808 = vsel %vm800, %v308, 0
        %v811 = vsel %vm800, %v309, 0
        %vm813 = vcmask 1041408
        %v815 = vsel %vm813, %v799, 0
        %817 = vmatprep.subr.mxu0 0.0
        %v818 = vand.u32 %v815, 4294901760
        %819 = vmatpush1.msra.mxu0 %v818
        %820 = vmatprep.subr.mxu0 0.0
        %821 = vmatpush1.msra.mxu0 0.0
        %822 = vmatprep.subr.mxu0 0.0
        %823 = vmatpush1.msra.mxu0 0.0
        %824 = vmatprep.subr.mxu0 0.0
        %825 = vmatpush1.msra.mxu0 0.0
        %826 = vmatprep.subr.mxu0 0.0
        %827 = vmatpush1.msra.mxu0 0.0
        %828 = vmatprep.subr.mxu0 0.0
        %829 = vmatpush1.msra.mxu0 0.0
        %830 = vmatprep.subr.mxu0 0.0
        %831 = vmatpush1.msra.mxu0 0.0
        %832 = vmatprep.subr.mxu0 0.0
        %833 = vmatpush1.msra.mxu0 0.0
        %834 = vmatprep.subr.mxu0 0.0
        %835 = vmatpush1.msra.mxu0 0.0
        %836 = vmatprep.subr.mxu0 0.0
        %837 = vmatpush1.msra.mxu0 0.0
        %838 = vmatprep.subr.mxu0 0.0
        %839 = vmatpush1.msra.mxu0 0.0
        %840 = vmatprep.subr.mxu0 0.0
        %841 = vmatpush1.msra.mxu0 0.0
        %842 = vmatprep.subr.mxu0 0.0
        %843 = vmatpush1.msra.mxu0 0.0
        %844 = vmatprep.subr.mxu0 0.0
        %845 = vmatpush1.msra.mxu0 0.0
        %846 = vmatprep.subr.mxu0 0.0
        %847 = vmatpush1.msra.mxu0 0.0
        %848 = vmatprep.subr.mxu0 0.0
        %849 = vmatpush1.msra.mxu0 0.0
        %850 = vmatprep.subr.mxu0 0.0
        %851 = vmatpush1.msra.mxu0 0.0
        %852 = vmatprep.subr.mxu0 0.0
        %853 = vmatpush1.msra.mxu0 0.0
        %854 = vmatprep.subr.mxu0 0.0
        %855 = vmatpush1.msra.mxu0 0.0
        %856 = vmatprep.subr.mxu0 0.0
        %857 = vmatpush1.msra.mxu0 0.0
        %858 = vmatprep.subr.mxu0 0.0
        %859 = vmatpush1.msra.mxu0 0.0
        %860 = vmatprep.subr.mxu0 0.0
        %861 = vmatpush1.msra.mxu0 0.0
        %862 = vmatprep.subr.mxu0 0.0
        %863 = vmatpush1.msra.mxu0 0.0
        %864 = vmatprep.subr.mxu0 0.0
        %865 = vmatpush1.msra.mxu0 0.0
        %866 = vmatprep.subr.mxu0 0.0
        %867 = vmatpush1.msra.mxu0 0.0
        %868 = vmatprep.subr.mxu0 0.0
        %869 = vmatpush1.msra.mxu0 0.0
        %870 = vmatprep.subr.mxu0 0.0
        %871 = vmatpush1.msra.mxu0 0.0
        %872 = vmatprep.subr.mxu0 0.0
        %873 = vmatpush1.msra.mxu0 0.0
        %874 = vmatprep.subr.mxu0 0.0
        %875 = vmatpush1.msra.mxu0 0.0
        %876 = vmatprep.subr.mxu0 0.0
        %877 = vmatpush1.msra.mxu0 0.0
        %878 = vmatprep.subr.mxu0 0.0
        %879 = vmatpush1.msra.mxu0 0.0
        %880 = vmatprep.subr.mxu0 0.0
        %881 = vmatpush1.msra.mxu0 0.0
        %882 = vmatprep.mubr.f32.mxu0 0.0
        %v883 = vand.u32 %v802, 4294901760
        %v884 = vsub.f32 %v802, %v883
        %v885 = vand.u32 %v884, 4294901760
        %v886 = vsub.f32 %v884, %v885
        %v887 = vand.u32 %v886, 4294901760
        %888 = vmatmul.mubr.f32.gmra.mrb[0].mxu0 %v887
        %v889 = vpop.f32.mrb[0].mxu0
        %v890 = vadd.f32 0.0, %v889
        %v891 = vpop.f32.mrb[0].mxu0
        %892 = vmatprep.mubr.f32.mxu0 0.0
        %v893 = vand.u32 %v805, 4294901760
        %v894 = vsub.f32 %v805, %v893
        %v895 = vand.u32 %v894, 4294901760
        %v896 = vsub.f32 %v894, %v895
        %v897 = vand.u32 %v896, 4294901760
        %898 = vmatmul.mubr.f32.gmra.mrb[0].mxu0 %v897
        %v899 = vpop.f32.mrb[0].mxu0
        %v900 = vadd.f32 0.0, %v899
        %v901 = vpop.f32.mrb[0].mxu0
        %902 = vmatprep.mubr.f32.mxu0 0.0
        %v903 = vand.u32 %v808, 4294901760
        %v904 = vsub.f32 %v808, %v903
        %v905 = vand.u32 %v904, 4294901760
        %v906 = vsub.f32 %v904, %v905
        %v907 = vand.u32 %v906, 4294901760
        %908 = vmatmul.mubr.f32.gmra.mrb[0].mxu0 %v907
        %v909 = vpop.f32.mrb[0].mxu0
        %v910 = vadd.f32 0.0, %v909
        %v911 = vpop.f32.mrb[0].mxu0
        %912 = vmatprep.mubr.f32.mxu0 0.0
        %v913 = vand.u32 %v811, 4294901760
        %v914 = vsub.f32 %v811, %v913
        %v915 = vand.u32 %v914, 4294901760
        %v916 = vsub.f32 %v914, %v915
        %v917 = vand.u32 %v916, 4294901760
        %918 = vmatmul.mubr.f32.gmra.mrb[0].mxu0 %v917
        %v919 = vpop.f32.mrb[0].mxu0
        %v920 = vadd.f32 0.0, %v919
        %v921 = vpop.f32.mrb[0].mxu0
        %922 = vdwg.mxu0
        %923 = vmatprep.subr.mxu0 0.0
        %v924 = vand.u32 %v815, 4294901760
        %v925 = vsub.f32 %v815, %v924
        %v926 = vand.u32 %v925, 4294901760
        %v927 = vsub.f32 %v925, %v926
        %v928 = vand.u32 %v927, 4294901760
        %929 = vmatpush1.msra.mxu0 %v928
        %930 = vmatprep.subr.mxu0 0.0
        %931 = vmatpush1.msra.mxu0 0.0
        %932 = vmatprep.subr.mxu0 0.0
        %933 = vmatpush1.msra.mxu0 0.0
        %934 = vmatprep.subr.mxu0 0.0
        %935 = vmatpush1.msra.mxu0 0.0
        %936 = vmatprep.subr.mxu0 0.0
        %937 = vmatpush1.msra.mxu0 0.0
        %938 = vmatprep.subr.mxu0 0.0
        %939 = vmatpush1.msra.mxu0 0.0
        %940 = vmatprep.subr.mxu0 0.0
        %941 = vmatpush1.msra.mxu0 0.0
        %942 = vmatprep.subr.mxu0 0.0
        %943 = vmatpush1.msra.mxu0 0.0
        %944 = vmatprep.subr.mxu0 0.0
        %945 = vmatpush1.msra.mxu0 0.0
        %946 = vmatprep.subr.mxu0 0.0
        %947 = vmatpush1.msra.mxu0 0.0
        %948 = vmatprep.subr.mxu0 0.0
        %949 = vmatpush1.msra.mxu0 0.0
        %950 = vmatprep.subr.mxu0 0.0
        %951 = vmatpush1.msra.mxu0 0.0
        %952 = vmatprep.subr.mxu0 0.0
        %953 = vmatpush1.msra.mxu0 0.0
        %954 = vmatprep.subr.mxu0 0.0
        %955 = vmatpush1.msra.mxu0 0.0
        %956 = vmatprep.subr.mxu0 0.0
        %957 = vmatpush1.msra.mxu0 0.0
        %958 = vmatprep.subr.mxu0 0.0
        %959 = vmatpush1.msra.mxu0 0.0
        %960 = vmatprep.subr.mxu0 0.0
        %961 = vmatpush1.msra.mxu0 0.0
        %962 = vmatprep.subr.mxu0 0.0
        %963 = vmatpush1.msra.mxu0 0.0
        %964 = vmatprep.subr.mxu0 0.0
        %965 = vmatpush1.msra.mxu0 0.0
        %966 = vmatprep.subr.mxu0 0.0
        %967 = vmatpush1.msra.mxu0 0.0
        %968 = vmatprep.subr.mxu0 0.0
        %969 = vmatpush1.msra.mxu0 0.0
        %970 = vmatprep.subr.mxu0 0.0
        %971 = vmatpush1.msra.mxu0 0.0
        %972 = vmatprep.subr.mxu0 0.0
        %973 = vmatpush1.msra.mxu0 0.0
        %974 = vmatprep.subr.mxu0 0.0
        %975 = vmatpush1.msra.mxu0 0.0
        %976 = vmatprep.subr.mxu0 0.0
        %977 = vmatpush1.msra.mxu0 0.0
        %978 = vmatprep.subr.mxu0 0.0
        %979 = vmatpush1.msra.mxu0 0.0
        %980 = vmatprep.subr.mxu0 0.0
        %981 = vmatpush1.msra.mxu0 0.0
        %982 = vmatprep.subr.mxu0 0.0
        %983 = vmatpush1.msra.mxu0 0.0
        %984 = vmatprep.subr.mxu0 0.0
        %985 = vmatpush1.msra.mxu0 0.0
        %986 = vmatprep.subr.mxu0 0.0
        %987 = vmatpush1.msra.mxu0 0.0
        %988 = vmatprep.subr.mxu0 0.0
        %989 = vmatpush1.msra.mxu0 0.0
        %990 = vmatprep.subr.mxu0 0.0
        %991 = vmatpush1.msra.mxu0 0.0
        %992 = vmatprep.mubr.f32.mxu0 0.0
        %v993 = vand.u32 %v802, 4294901760
        %994 = vmatmul.mubr.f32.gmra.mrb[0].mxu0 %v993
        %v995 = vpop.f32.mrb[0].mxu0
        %v996 = vadd.f32 %v890, %v995
        %v997 = vpop.f32.mrb[0].mxu0
        %998 = vmatprep.mubr.f32.mxu0 0.0
        %v999 = vand.u32 %v805, 4294901760
        %1000 = vmatmul.mubr.f32.gmra.mrb[0].mxu0 %v999
        %v1001 = vpop.f32.mrb[0].mxu0
        %v1002 = vadd.f32 %v900, %v1001
        %v1003 = vpop.f32.mrb[0].mxu0
        %1004 = vmatprep.mubr.f32.mxu0 0.0
        %v1005 = vand.u32 %v808, 4294901760
        %1006 = vmatmul.mubr.f32.gmra.mrb[0].mxu0 %v1005
        %v1007 = vpop.f32.mrb[0].mxu0
        %v1008 = vadd.f32 %v910, %v1007
        %v1009 = vpop.f32.mrb[0].mxu0
        %1010 = vmatprep.mubr.f32.mxu0 0.0
        %v1011 = vand.u32 %v811, 4294901760
        %1012 = vmatmul.mubr.f32.gmra.mrb[0].mxu0 %v1011
        %v1013 = vpop.f32.mrb[0].mxu0
        %v1014 = vadd.f32 %v920, %v1013
        %v1015 = vpop.f32.mrb[0].mxu0
        %1016 = vdwg.mxu0
        %1017 = vmatprep.subr.mxu0 0.0
        %v1018 = vand.u32 %v815, 4294901760
        %v1019 = vsub.f32 %v815, %v1018
        %1020 = vmatpush1.msra.mxu0 %v1019
        %1021 = vmatprep.subr.mxu0 0.0
        %1022 = vmatpush1.msra.mxu0 0.0
        %1023 = vmatprep.subr.mxu0 0.0
        %1024 = vmatpush1.msra.mxu0 0.0
        %1025 = vmatprep.subr.mxu0 0.0
        %1026 = vmatpush1.msra.mxu0 0.0
        %1027 = vmatprep.subr.mxu0 0.0
        %1028 = vmatpush1.msra.mxu0 0.0
        %1029 = vmatprep.subr.mxu0 0.0
        %1030 = vmatpush1.msra.mxu0 0.0
        %1031 = vmatprep.subr.mxu0 0.0
        %1032 = vmatpush1.msra.mxu0 0.0
        %1033 = vmatprep.subr.mxu0 0.0
        %1034 = vmatpush1.msra.mxu0 0.0
        %1035 = vmatprep.subr.mxu0 0.0
        %1036 = vmatpush1.msra.mxu0 0.0
        %1037 = vmatprep.subr.mxu0 0.0
        %1038 = vmatpush1.msra.mxu0 0.0
        %1039 = vmatprep.subr.mxu0 0.0
        %1040 = vmatpush1.msra.mxu0 0.0
        %1041 = vmatprep.subr.mxu0 0.0
        %1042 = vmatpush1.msra.mxu0 0.0
        %1043 = vmatprep.subr.mxu0 0.0
        %1044 = vmatpush1.msra.mxu0 0.0
        %1045 = vmatprep.subr.mxu0 0.0
        %1046 = vmatpush1.msra.mxu0 0.0
        %1047 = vmatprep.subr.mxu0 0.0
        %1048 = vmatpush1.msra.mxu0 0.0
        %1049 = vmatprep.subr.mxu0 0.0
        %1050 = vmatpush1.msra.mxu0 0.0
        %1051 = vmatprep.subr.mxu0 0.0
        %1052 = vmatpush1.msra.mxu0 0.0
        %1053 = vmatprep.subr.mxu0 0.0
        %1054 = vmatpush1.msra.mxu0 0.0
        %1055 = vmatprep.subr.mxu0 0.0
        %1056 = vmatpush1.msra.mxu0 0.0
        %1057 = vmatprep.subr.mxu0 0.0
        %1058 = vmatpush1.msra.mxu0 0.0
        %1059 = vmatprep.subr.mxu0 0.0
        %1060 = vmatpush1.msra.mxu0 0.0
        %1061 = vmatprep.subr.mxu0 0.0
        %1062 = vmatpush1.msra.mxu0 0.0
        %1063 = vmatprep.subr.mxu0 0.0
        %1064 = vmatpush1.msra.mxu0 0.0
        %1065 = vmatprep.subr.mxu0 0.0
        %1066 = vmatpush1.msra.mxu0 0.0
        %1067 = vmatprep.subr.mxu0 0.0
        %1068 = vmatpush1.msra.mxu0 0.0
        %1069 = vmatprep.subr.mxu0 0.0
        %1070 = vmatpush1.msra.mxu0 0.0
        %1071 = vmatprep.subr.mxu0 0.0
        %1072 = vmatpush1.msra.mxu0 0.0
        %1073 = vmatprep.subr.mxu0 0.0
        %1074 = vmatpush1.msra.mxu0 0.0
        %1075 = vmatprep.subr.mxu0 0.0
        %1076 = vmatpush1.msra.mxu0 0.0
        %1077 = vmatprep.subr.mxu0 0.0
        %1078 = vmatpush1.msra.mxu0 0.0
        %1079 = vmatprep.subr.mxu0 0.0
        %1080 = vmatpush1.msra.mxu0 0.0
        %1081 = vmatprep.subr.mxu0 0.0
        %1082 = vmatpush1.msra.mxu0 0.0
        %1083 = vmatprep.mubr.f32.mxu0 0.0
        %v1084 = vand.u32 %v802, 4294901760
        %v1085 = vsub.f32 %v802, %v1084
        %1086 = vmatmul.mubr.f32.gmra.mrb[0].mxu0 %v1085
        %v1087 = vpop.f32.mrb[0].mxu0
        %v1088 = vadd.f32 %v996, %v1087
        %v1089 = vpop.f32.mrb[0].mxu0
        %1090 = vmatprep.mubr.f32.mxu0 0.0
        %v1091 = vand.u32 %v805, 4294901760
        %v1092 = vsub.f32 %v805, %v1091
        %1093 = vmatmul.mubr.f32.gmra.mrb[0].mxu0 %v1092
        %v1094 = vpop.f32.mrb[0].mxu0
        %v1095 = vadd.f32 %v1002, %v1094
        %v1096 = vpop.f32.mrb[0].mxu0
        %1097 = vmatprep.mubr.f32.mxu0 0.0
        %v1098 = vand.u32 %v808, 4294901760
        %v1099 = vsub.f32 %v808, %v1098
        %1100 = vmatmul.mubr.f32.gmra.mrb[0].mxu0 %v1099
        %v1101 = vpop.f32.mrb[0].mxu0
        %v1102 = vadd.f32 %v1008, %v1101
        %v1103 = vpop.f32.mrb[0].mxu0
        %1104 = vmatprep.mubr.f32.mxu0 0.0
        %v1105 = vand.u32 %v811, 4294901760
        %v1106 = vsub.f32 %v811, %v1105
        %1107 = vmatmul.mubr.f32.gmra.mrb[0].mxu0 %v1106
        %v1108 = vpop.f32.mrb[0].mxu0
        %v1109 = vadd.f32 %v1014, %v1108
        %v1110 = vpop.f32.mrb[0].mxu0
        %1111 = vdwg.mxu0
        %1112 = vmatprep.subr.mxu0 0.0
        %v1113 = vand.u32 %v815, 4294901760
        %1114 = vmatpush1.msra.mxu0 %v1113
        %1115 = vmatprep.subr.mxu0 0.0
        %1116 = vmatpush1.msra.mxu0 0.0
        %1117 = vmatprep.subr.mxu0 0.0
        %1118 = vmatpush1.msra.mxu0 0.0
        %1119 = vmatprep.subr.mxu0 0.0
        %1120 = vmatpush1.msra.mxu0 0.0
        %1121 = vmatprep.subr.mxu0 0.0
        %1122 = vmatpush1.msra.mxu0 0.0
        %1123 = vmatprep.subr.mxu0 0.0
        %1124 = vmatpush1.msra.mxu0 0.0
        %1125 = vmatprep.subr.mxu0 0.0
        %1126 = vmatpush1.msra.mxu0 0.0
        %1127 = vmatprep.subr.mxu0 0.0
        %1128 = vmatpush1.msra.mxu0 0.0
        %1129 = vmatprep.subr.mxu0 0.0
        %1130 = vmatpush1.msra.mxu0 0.0
        %1131 = vmatprep.subr.mxu0 0.0
        %1132 = vmatpush1.msra.mxu0 0.0
        %1133 = vmatprep.subr.mxu0 0.0
        %1134 = vmatpush1.msra.mxu0 0.0
        %1135 = vmatprep.subr.mxu0 0.0
        %1136 = vmatpush1.msra.mxu0 0.0
        %1137 = vmatprep.subr.mxu0 0.0
        %1138 = vmatpush1.msra.mxu0 0.0
        %1139 = vmatprep.subr.mxu0 0.0
        %1140 = vmatpush1.msra.mxu0 0.0
        %1141 = vmatprep.subr.mxu0 0.0
        %1142 = vmatpush1.msra.mxu0 0.0
        %1143 = vmatprep.subr.mxu0 0.0
        %1144 = vmatpush1.msra.mxu0 0.0
        %1145 = vmatprep.subr.mxu0 0.0
        %1146 = vmatpush1.msra.mxu0 0.0
        %1147 = vmatprep.subr.mxu0 0.0
        %1148 = vmatpush1.msra.mxu0 0.0
        %1149 = vmatprep.subr.mxu0 0.0
        %1150 = vmatpush1.msra.mxu0 0.0
        %1151 = vmatprep.subr.mxu0 0.0
        %1152 = vmatpush1.msra.mxu0 0.0
        %1153 = vmatprep.subr.mxu0 0.0
        %1154 = vmatpush1.msra.mxu0 0.0
        %1155 = vmatprep.subr.mxu0 0.0
        %1156 = vmatpush1.msra.mxu0 0.0
        %1157 = vmatprep.subr.mxu0 0.0
        %1158 = vmatpush1.msra.mxu0 0.0
        %1159 = vmatprep.subr.mxu0 0.0
        %1160 = vmatpush1.msra.mxu0 0.0
        %1161 = vmatprep.subr.mxu0 0.0
        %1162 = vmatpush1.msra.mxu0 0.0
        %1163 = vmatprep.subr.mxu0 0.0
        %1164 = vmatpush1.msra.mxu0 0.0
        %1165 = vmatprep.subr.mxu0 0.0
        %1166 = vmatpush1.msra.mxu0 0.0
        %1167 = vmatprep.subr.mxu0 0.0
        %1168 = vmatpush1.msra.mxu0 0.0
        %1169 = vmatprep.subr.mxu0 0.0
        %1170 = vmatpush1.msra.mxu0 0.0
        %1171 = vmatprep.subr.mxu0 0.0
        %1172 = vmatpush1.msra.mxu0 0.0
        %1173 = vmatprep.subr.mxu0 0.0
        %1174 = vmatpush1.msra.mxu0 0.0
        %1175 = vmatprep.subr.mxu0 0.0
        %1176 = vmatpush1.msra.mxu0 0.0
        %1177 = vmatprep.mubr.f32.mxu0 0.0
        %v1178 = vand.u32 %v802, 4294901760
        %v1179 = vsub.f32 %v802, %v1178
        %v1180 = vand.u32 %v1179, 4294901760
        %1181 = vmatmul.mubr.f32.gmra.mrb[0].mxu0 %v1180
        %v1182 = vpop.f32.mrb[0].mxu0
        %v1183 = vadd.f32 %v1088, %v1182
        %v1184 = vpop.f32.mrb[0].mxu0
        %1185 = vmatprep.mubr.f32.mxu0 0.0
        %v1186 = vand.u32 %v805, 4294901760
        %v1187 = vsub.f32 %v805, %v1186
        %v1188 = vand.u32 %v1187, 4294901760
        %1189 = vmatmul.mubr.f32.gmra.mrb[0].mxu0 %v1188
        %v1190 = vpop.f32.mrb[0].mxu0
        %v1191 = vadd.f32 %v1095, %v1190
        %v1192 = vpop.f32.mrb[0].mxu0
        %1193 = vmatprep.mubr.f32.mxu0 0.0
        %v1194 = vand.u32 %v808, 4294901760
        %v1195 = vsub.f32 %v808, %v1194
        %v1196 = vand.u32 %v1195, 4294901760
        %1197 = vmatmul.mubr.f32.gmra.mrb[0].mxu0 %v1196
        %v1198 = vpop.f32.mrb[0].mxu0
        %v1199 = vadd.f32 %v1102, %v1198
        %v1200 = vpop.f32.mrb[0].mxu0
        %1201 = vmatprep.mubr.f32.mxu0 0.0
        %v1202 = vand.u32 %v811, 4294901760
        %v1203 = vsub.f32 %v811, %v1202
        %v1204 = vand.u32 %v1203, 4294901760
        %1205 = vmatmul.mubr.f32.gmra.mrb[0].mxu0 %v1204
        %v1206 = vpop.f32.mrb[0].mxu0
        %v1207 = vadd.f32 %v1109, %v1206
        %v1208 = vpop.f32.mrb[0].mxu0
        %1209 = vdwg.mxu0
        %1210 = vmatprep.subr.mxu0 0.0
        %v1211 = vand.u32 %v815, 4294901760
        %v1212 = vsub.f32 %v815, %v1211
        %v1213 = vand.u32 %v1212, 4294901760
        %1214 = vmatpush1.msra.mxu0 %v1213
        %1215 = vmatprep.subr.mxu0 0.0
        %1216 = vmatpush1.msra.mxu0 0.0
        %1217 = vmatprep.subr.mxu0 0.0
        %1218 = vmatpush1.msra.mxu0 0.0
        %1219 = vmatprep.subr.mxu0 0.0
        %1220 = vmatpush1.msra.mxu0 0.0
        %1221 = vmatprep.subr.mxu0 0.0
        %1222 = vmatpush1.msra.mxu0 0.0
        %1223 = vmatprep.subr.mxu0 0.0
        %1224 = vmatpush1.msra.mxu0 0.0
        %1225 = vmatprep.subr.mxu0 0.0
        %1226 = vmatpush1.msra.mxu0 0.0
        %1227 = vmatprep.subr.mxu0 0.0
        %1228 = vmatpush1.msra.mxu0 0.0
        %1229 = vmatprep.subr.mxu0 0.0
        %1230 = vmatpush1.msra.mxu0 0.0
        %1231 = vmatprep.subr.mxu0 0.0
        %1232 = vmatpush1.msra.mxu0 0.0
        %1233 = vmatprep.subr.mxu0 0.0
        %1234 = vmatpush1.msra.mxu0 0.0
        %1235 = vmatprep.subr.mxu0 0.0
        %1236 = vmatpush1.msra.mxu0 0.0
        %1237 = vmatprep.subr.mxu0 0.0
        %1238 = vmatpush1.msra.mxu0 0.0
        %1239 = vmatprep.subr.mxu0 0.0
        %1240 = vmatpush1.msra.mxu0 0.0
        %1241 = vmatprep.subr.mxu0 0.0
        %1242 = vmatpush1.msra.mxu0 0.0
        %1243 = vmatprep.subr.mxu0 0.0
        %1244 = vmatpush1.msra.mxu0 0.0
        %1245 = vmatprep.subr.mxu0 0.0
        %1246 = vmatpush1.msra.mxu0 0.0
        %1247 = vmatprep.subr.mxu0 0.0
        %1248 = vmatpush1.msra.mxu0 0.0
        %1249 = vmatprep.subr.mxu0 0.0
        %1250 = vmatpush1.msra.mxu0 0.0
        %1251 = vmatprep.subr.mxu0 0.0
        %1252 = vmatpush1.msra.mxu0 0.0
        %1253 = vmatprep.subr.mxu0 0.0
        %1254 = vmatpush1.msra.mxu0 0.0
        %1255 = vmatprep.subr.mxu0 0.0
        %1256 = vmatpush1.msra.mxu0 0.0
        %1257 = vmatprep.subr.mxu0 0.0
        %1258 = vmatpush1.msra.mxu0 0.0
        %1259 = vmatprep.subr.mxu0 0.0
        %1260 = vmatpush1.msra.mxu0 0.0
        %1261 = vmatprep.subr.mxu0 0.0
        %1262 = vmatpush1.msra.mxu0 0.0
        %1263 = vmatprep.subr.mxu0 0.0
        %1264 = vmatpush1.msra.mxu0 0.0
        %1265 = vmatprep.subr.mxu0 0.0
        %1266 = vmatpush1.msra.mxu0 0.0
        %1267 = vmatprep.subr.mxu0 0.0
        %1268 = vmatpush1.msra.mxu0 0.0
        %1269 = vmatprep.subr.mxu0 0.0
        %1270 = vmatpush1.msra.mxu0 0.0
        %1271 = vmatprep.subr.mxu0 0.0
        %1272 = vmatpush1.msra.mxu0 0.0
        %1273 = vmatprep.subr.mxu0 0.0
        %1274 = vmatpush1.msra.mxu0 0.0
        %1275 = vmatprep.subr.mxu0 0.0
        %1276 = vmatpush1.msra.mxu0 0.0
        %1277 = vmatprep.mubr.f32.mxu0 0.0
        %v1278 = vand.u32 %v802, 4294901760
        %1279 = vmatmul.mubr.f32.gmra.mrb[0].mxu0 %v1278
        %v1280 = vpop.f32.mrb[0].mxu0
        %v1281 = vadd.f32 %v1183, %v1280
        %v1282 = vpop.f32.mrb[0].mxu0
        %1283 = vmatprep.mubr.f32.mxu0 0.0
        %v1284 = vand.u32 %v805, 4294901760
        %1285 = vmatmul.mubr.f32.gmra.mrb[0].mxu0 %v1284
        %v1286 = vpop.f32.mrb[0].mxu0
        %v1287 = vadd.f32 %v1191, %v1286
        %v1288 = vpop.f32.mrb[0].mxu0
        %1289 = vmatprep.mubr.f32.mxu0 0.0
        %v1290 = vand.u32 %v808, 4294901760
        %1291 = vmatmul.mubr.f32.gmra.mrb[0].mxu0 %v1290
        %v1292 = vpop.f32.mrb[0].mxu0
        %v1293 = vadd.f32 %v1199, %v1292
        %v1294 = vpop.f32.mrb[0].mxu0
        %1295 = vmatprep.mubr.f32.mxu0 0.0
        %v1296 = vand.u32 %v811, 4294901760
        %1297 = vmatmul.mubr.f32.gmra.mrb[0].mxu0 %v1296
        %v1298 = vpop.f32.mrb[0].mxu0
        %v1299 = vadd.f32 %v1207, %v1298
        %v1300 = vpop.f32.mrb[0].mxu0
        %1301 = vdwg.mxu0
        %1302 = vmatprep.subr.mxu0 0.0
        %v1303 = vand.u32 %v815, 4294901760
        %1304 = vmatpush1.msra.mxu0 %v1303
        %1305 = vmatprep.subr.mxu0 0.0
        %1306 = vmatpush1.msra.mxu0 0.0
        %1307 = vmatprep.subr.mxu0 0.0
        %1308 = vmatpush1.msra.mxu0 0.0
        %1309 = vmatprep.subr.mxu0 0.0
        %1310 = vmatpush1.msra.mxu0 0.0
        %1311 = vmatprep.subr.mxu0 0.0
        %1312 = vmatpush1.msra.mxu0 0.0
        %1313 = vmatprep.subr.mxu0 0.0
        %1314 = vmatpush1.msra.mxu0 0.0
        %1315 = vmatprep.subr.mxu0 0.0
        %1316 = vmatpush1.msra.mxu0 0.0
        %1317 = vmatprep.subr.mxu0 0.0
        %1318 = vmatpush1.msra.mxu0 0.0
        %1319 = vmatprep.subr.mxu0 0.0
        %1320 = vmatpush1.msra.mxu0 0.0
        %1321 = vmatprep.subr.mxu0 0.0
        %1322 = vmatpush1.msra.mxu0 0.0
        %1323 = vmatprep.subr.mxu0 0.0
        %1324 = vmatpush1.msra.mxu0 0.0
        %1325 = vmatprep.subr.mxu0 0.0
        %1326 = vmatpush1.msra.mxu0 0.0
        %1327 = vmatprep.subr.mxu0 0.0
        %1328 = vmatpush1.msra.mxu0 0.0
        %1329 = vmatprep.subr.mxu0 0.0
        %1330 = vmatpush1.msra.mxu0 0.0
        %1331 = vmatprep.subr.mxu0 0.0
        %1332 = vmatpush1.msra.mxu0 0.0
        %1333 = vmatprep.subr.mxu0 0.0
        %1334 = vmatpush1.msra.mxu0 0.0
        %1335 = vmatprep.subr.mxu0 0.0
        %1336 = vmatpush1.msra.mxu0 0.0
        %1337 = vmatprep.subr.mxu0 0.0
        %1338 = vmatpush1.msra.mxu0 0.0
        %1339 = vmatprep.subr.mxu0 0.0
        %1340 = vmatpush1.msra.mxu0 0.0
        %1341 = vmatprep.subr.mxu0 0.0
        %1342 = vmatpush1.msra.mxu0 0.0
        %1343 = vmatprep.subr.mxu0 0.0
        %1344 = vmatpush1.msra.mxu0 0.0
        %1345 = vmatprep.subr.mxu0 0.0
        %1346 = vmatpush1.msra.mxu0 0.0
        %1347 = vmatprep.subr.mxu0 0.0
        %1348 = vmatpush1.msra.mxu0 0.0
        %1349 = vmatprep.subr.mxu0 0.0
        %1350 = vmatpush1.msra.mxu0 0.0
        %1351 = vmatprep.subr.mxu0 0.0
        %1352 = vmatpush1.msra.mxu0 0.0
        %1353 = vmatprep.subr.mxu0 0.0
        %1354 = vmatpush1.msra.mxu0 0.0
        %1355 = vmatprep.subr.mxu0 0.0
        %1356 = vmatpush1.msra.mxu0 0.0
        %1357 = vmatprep.subr.mxu0 0.0
        %1358 = vmatpush1.msra.mxu0 0.0
        %1359 = vmatprep.subr.mxu0 0.0
        %1360 = vmatpush1.msra.mxu0 0.0
        %1361 = vmatprep.subr.mxu0 0.0
        %1362 = vmatpush1.msra.mxu0 0.0
        %1363 = vmatprep.subr.mxu0 0.0
        %1364 = vmatpush1.msra.mxu0 0.0
        %1365 = vmatprep.subr.mxu0 0.0
        %1366 = vmatpush1.msra.mxu0 0.0
        %1367 = vmatprep.mubr.f32.mxu0 0.0
        %v1368 = vand.u32 %v802, 4294901760
        %1369 = vmatmul.mubr.f32.gmra.mrb[0].mxu0 %v1368
        %v1370 = vpop.f32.mrb[0].mxu0
        %v1371 = vadd.f32 %v1281, %v1370
        %v1372 = vpop.f32.mrb[0].mxu0
        %1373 = vmatprep.mubr.f32.mxu0 0.0
        %v1374 = vand.u32 %v805, 4294901760
        %1375 = vmatmul.mubr.f32.gmra.mrb[0].mxu0 %v1374
        %v1376 = vpop.f32.mrb[0].mxu0
        %v1377 = vadd.f32 %v1287, %v1376
        %v1378 = vpop.f32.mrb[0].mxu0
        %1379 = vmatprep.mubr.f32.mxu0 0.0
        %v1380 = vand.u32 %v808, 4294901760
        %1381 = vmatmul.mubr.f32.gmra.mrb[0].mxu0 %v1380
        %v1382 = vpop.f32.mrb[0].mxu0
        %v1383 = vadd.f32 %v1293, %v1382
        %v1384 = vpop.f32.mrb[0].mxu0
        %1385 = vmatprep.mubr.f32.mxu0 0.0
        %v1386 = vand.u32 %v811, 4294901760
        %1387 = vmatmul.mubr.f32.gmra.mrb[0].mxu0 %v1386
        %v1388 = vpop.f32.mrb[0].mxu0
        %v1389 = vadd.f32 %v1299, %v1388
        %v1390 = vpop.f32.mrb[0].mxu0
        %1391 = vdwg.mxu0
        %1396 = vrot.lane.b32.xlu0 %v1371, 127
        %v1397 = vpop.permute.xlu0 %1396
        %1398 = vrot.lane.b32.xlu0 %v1377, 127
        %v1399 = vpop.permute.xlu0 %1398
        %1400 = vrot.lane.b32.xlu0 %v1383, 127
        %v1401 = vpop.permute.xlu0 %1400
        %1402 = vrot.lane.b32.xlu0 %v1389, 127
        %v1403 = vpop.permute.xlu0 %1402
        %v1408 = vadd.f32 %v1371, %v1397
        %v1409 = vadd.f32 %v1377, %v1399
        %v1410 = vadd.f32 %v1383, %v1401
        %v1411 = vadd.f32 %v1389, %v1403
        %v1412 = vxor.u32 %v1408, 2147483648
        %v1413 = vxor.u32 %v1409, 2147483648
        %v1414 = vxor.u32 %v1410, 2147483648
        %v1415 = vxor.u32 %v1411, 2147483648
        %v1416 = vmul.f32 %v1412, 1.442695
        %v1417 = vpow.pop %v1416
        %v1418 = vmul.f32 %v1413, 1.442695
        %v1419 = vpow.pop %v1418
        %v1420 = vmul.f32 %v1414, 1.442695
        %v1421 = vpow.pop %v1420
        %v1422 = vmul.f32 %v1415, 1.442695
        %v1423 = vpow.pop %v1422
        %v1424 = vadd.f32 %v1417, 1.0
        %v1425 = vadd.f32 %v1419, 1.0
        %v1426 = vadd.f32 %v1421, 1.0
        %v1427 = vadd.f32 %v1423, 1.0
        %v1428 = vrcp.pop %v1424
        %v1429 = vmul.f32 1.0, %v1428
        %v1430 = vrcp.pop %v1425
        %v1431 = vmul.f32 1.0, %v1430
        %v1432 = vrcp.pop %v1426
        %v1433 = vmul.f32 1.0, %v1432
        %v1434 = vrcp.pop %v1427
        %v1435 = vmul.f32 1.0, %v1434
        %vm1436 = vcmask 7168
        %1437 = vst.msk [vmem:[#allocation3] sm:$0xff] %vm1436, %v1429
        %1438 = vst.msk [vmem:[#allocation3 + $0x8] sm:$0xff] %vm1436, %v1431
        %1439 = vst.msk [vmem:[#allocation3 + $0x10] sm:$0xff] %vm1436, %v1433
        %1440 = vst.msk [vmem:[#allocation3 + $0x18] sm:$0xff] %vm1436, %v1435
        loop: start=0, step=1, limit=4
        $region56: #{tpu_custom_call.1} parent=39 // loop_pre_header
          _
        $region57: #{tpu_custom_call.1} parent=39 // loop_header
          %s1442 = sphi 0, %s1446
          %p1443 = scmp.ge.s32.totalorder %s1442, 4
          %v1447 = vphi 0.0, %v1492
          %v1448 = vphi 0.0, %v1493
          %v1449 = vphi 0.0, %v1494
          %v1450 = vphi 0.0, %v1495
          %v1451 = vphi 0.0, %v1496
          %v1452 = vphi 0.0, %v1497
          %v1453 = vphi 0.0, %v1498
          %v1454 = vphi 0.0, %v1499
          %v1455 = vphi -inf, %v1500
          %v1456 = vphi -inf, %v1501
          %v1457 = vphi -inf, %v1502
          %v1458 = vphi -inf, %v1503
          %v1459 = vphi -inf, %v1504
          %v1460 = vphi -inf, %v1505
          %v1461 = vphi -inf, %v1506
          %v1462 = vphi -inf, %v1507
        $region58: #{tpu_custom_call.1} parent=39 // loop_header_branch
          %1445 = sbr.rel (%p1443) target = $region62
        $region59: #{tpu_custom_call.1} parent=39 // loop_body
          %s1463 = smul.u32 %s1442, 8
          %s1464 = sshra.s32 %s1463, 3
          %s1465 = sand.u32 %s1463, 7
          %s1466 = smul.u32 %s1464, 8
          %s1467 = smul.addr %s1466, 8
          %s1468 = scalar_lea.vmem %s225, %s1467 [#allocation4]
          %v1469 = vld [vmem:[%s1468] sm:$0xff]
          %v1470 = vld [vmem:[%s1468 + $0x8] sm:$0xff]
          %v1471 = vld [vmem:[%s1468 + $0x10] sm:$0xff]
          %v1472 = vld [vmem:[%s1468 + $0x18] sm:$0xff]
          %v1473 = vld [vmem:[%s1468 + $0x20] sm:$0xff]
          %v1474 = vld [vmem:[%s1468 + $0x28] sm:$0xff]
          %v1475 = vld [vmem:[%s1468 + $0x30] sm:$0xff]
          %v1476 = vld [vmem:[%s1468 + $0x38] sm:$0xff]
          %s1477 = scalar_lea.vmem [#allocation3], %s1463
          %v1478 = vld [vmem:[%s1477] sm:$0xff]
          %1480 = vset.pattern.permute.xlu0 0
          %1481 = vperm.xlu0 %1480, %v1478
          %v1482 = vpop.permute.xlu0 %1481
          %v1484 = vmul.f32 %v1469, %v1482
          %v1485 = vmul.f32 %v1470, %v1482
          %v1486 = vmul.f32 %v1471, %v1482
          %v1487 = vmul.f32 %v1472, %v1482
          %v1488 = vmul.f32 %v1473, %v1482
          %v1489 = vmul.f32 %v1474, %v1482
          %v1490 = vmul.f32 %v1475, %v1482
          %v1491 = vmul.f32 %v1476, %v1482
          %v1492 = vadd.f32 %v1447, %v1484
          %v1493 = vadd.f32 %v1448, %v1485
          %v1494 = vadd.f32 %v1449, %v1486
          %v1495 = vadd.f32 %v1450, %v1487
          %v1496 = vadd.f32 %v1451, %v1488
          %v1497 = vadd.f32 %v1452, %v1489
          %v1498 = vadd.f32 %v1453, %v1490
          %v1499 = vadd.f32 %v1454, %v1491
          %v1500 = vmax.f32 %v1455, %v1484
          %v1501 = vmax.f32 %v1456, %v1485
          %v1502 = vmax.f32 %v1457, %v1486
          %v1503 = vmax.f32 %v1458, %v1487
          %v1504 = vmax.f32 %v1459, %v1488
          %v1505 = vmax.f32 %v1460, %v1489
          %v1506 = vmax.f32 %v1461, %v1490
          %v1507 = vmax.f32 %v1462, %v1491
        $region60: #{tpu_custom_call.1} parent=39 // loop_footer
          %s1446 = sadd.s32 1, %s1442
        $region61: #{tpu_custom_call.1} parent=39 // loop_footer_branch
          %1441 = sbr.rel target = $region57
        $region62: #{tpu_custom_call.1} parent=39 // loop_exit
          _
        %v1508 = vrot.slane %v1447, 4
        %v1509 = vadd.f32 %v1447, %v1508
        %v1510 = vrot.slane %v1509, 2
        %v1511 = vadd.f32 %v1509, %v1510
        %v1512 = vrot.slane %v1511, 1
        %v1513 = vadd.f32 %v1511, %v1512
        %v1514 = vrot.slane %v1448, 4
        %v1515 = vadd.f32 %v1448, %v1514
        %v1516 = vrot.slane %v1515, 2
        %v1517 = vadd.f32 %v1515, %v1516
        %v1518 = vrot.slane %v1517, 1
        %v1519 = vadd.f32 %v1517, %v1518
        %v1520 = vrot.slane %v1449, 4
        %v1521 = vadd.f32 %v1449, %v1520
        %v1522 = vrot.slane %v1521, 2
        %v1523 = vadd.f32 %v1521, %v1522
        %v1524 = vrot.slane %v1523, 1
        %v1525 = vadd.f32 %v1523, %v1524
        %v1526 = vrot.slane %v1450, 4
        %v1527 = vadd.f32 %v1450, %v1526
        %v1528 = vrot.slane %v1527, 2
        %v1529 = vadd.f32 %v1527, %v1528
        %v1530 = vrot.slane %v1529, 1
        %v1531 = vadd.f32 %v1529, %v1530
        %v1532 = vrot.slane %v1451, 4
        %v1533 = vadd.f32 %v1451, %v1532
        %v1534 = vrot.slane %v1533, 2
        %v1535 = vadd.f32 %v1533, %v1534
        %v1536 = vrot.slane %v1535, 1
        %v1537 = vadd.f32 %v1535, %v1536
        %v1538 = vrot.slane %v1452, 4
        %v1539 = vadd.f32 %v1452, %v1538
        %v1540 = vrot.slane %v1539, 2
        %v1541 = vadd.f32 %v1539, %v1540
        %v1542 = vrot.slane %v1541, 1
        %v1543 = vadd.f32 %v1541, %v1542
        %v1544 = vrot.slane %v1453, 4
        %v1545 = vadd.f32 %v1453, %v1544
        %v1546 = vrot.slane %v1545, 2
        %v1547 = vadd.f32 %v1545, %v1546
        %v1548 = vrot.slane %v1547, 1
        %v1549 = vadd.f32 %v1547, %v1548
        %v1550 = vrot.slane %v1454, 4
        %v1551 = vadd.f32 %v1454, %v1550
        %v1552 = vrot.slane %v1551, 2
        %v1553 = vadd.f32 %v1551, %v1552
        %v1554 = vrot.slane %v1553, 1
        %v1555 = vadd.f32 %v1553, %v1554
        %v1556 = vmul.f32 %v1513, 0.03125
        %v1557 = vmul.f32 %v1519, 0.03125
        %v1558 = vmul.f32 %v1525, 0.03125
        %v1559 = vmul.f32 %v1531, 0.03125
        %v1560 = vmul.f32 %v1537, 0.03125
        %v1561 = vmul.f32 %v1543, 0.03125
        %v1562 = vmul.f32 %v1549, 0.03125
        %v1563 = vmul.f32 %v1555, 0.03125
        %v1564 = vrot.slane %v1455, 4
        %v1565 = vmax.f32 %v1455, %v1564
        %v1566 = vrot.slane %v1565, 2
        %v1567 = vmax.f32 %v1565, %v1566
        %v1568 = vrot.slane %v1567, 1
        %v1569 = vmax.f32 %v1567, %v1568
        %v1570 = vrot.slane %v1456, 4
        %v1571 = vmax.f32 %v1456, %v1570
        %v1572 = vrot.slane %v1571, 2
        %v1573 = vmax.f32 %v1571, %v1572
        %v1574 = vrot.slane %v1573, 1
        %v1575 = vmax.f32 %v1573, %v1574
        %v1576 = vrot.slane %v1457, 4
        %v1577 = vmax.f32 %v1457, %v1576
        %v1578 = vrot.slane %v1577, 2
        %v1579 = vmax.f32 %v1577, %v1578
        %v1580 = vrot.slane %v1579, 1
        %v1581 = vmax.f32 %v1579, %v1580
        %v1582 = vrot.slane %v1458, 4
        %v1583 = vmax.f32 %v1458, %v1582
        %v1584 = vrot.slane %v1583, 2
        %v1585 = vmax.f32 %v1583, %v1584
        %v1586 = vrot.slane %v1585, 1
        %v1587 = vmax.f32 %v1585, %v1586
        %v1588 = vrot.slane %v1459, 4
        %v1589 = vmax.f32 %v1459, %v1588
        %v1590 = vrot.slane %v1589, 2
        %v1591 = vmax.f32 %v1589, %v1590
        %v1592 = vrot.slane %v1591, 1
        %v1593 = vmax.f32 %v1591, %v1592
        %v1594 = vrot.slane %v1460, 4
        %v1595 = vmax.f32 %v1460, %v1594
        %v1596 = vrot.slane %v1595, 2
        %v1597 = vmax.f32 %v1595, %v1596
        %v1598 = vrot.slane %v1597, 1
        %v1599 = vmax.f32 %v1597, %v1598
        %v1600 = vrot.slane %v1461, 4
        %v1601 = vmax.f32 %v1461, %v1600
        %v1602 = vrot.slane %v1601, 2
        %v1603 = vmax.f32 %v1601, %v1602
        %v1604 = vrot.slane %v1603, 1
        %v1605 = vmax.f32 %v1603, %v1604
        %v1606 = vrot.slane %v1462, 4
        %v1607 = vmax.f32 %v1462, %v1606
        %v1608 = vrot.slane %v1607, 2
        %v1609 = vmax.f32 %v1607, %v1608
        %v1610 = vrot.slane %v1609, 1
        %v1611 = vmax.f32 %v1609, %v1610
        %v1612 = vld [vmem:[%s3] sm:$0xff]
        %s1613 = sld [smem:[#allocation8]]
        %v1614 = vstv %s1613
        %v1615 = vmul.f32 %v1614, %v1556
        %v1616 = vmul.f32 %v1614, %v1557
        %v1617 = vmul.f32 %v1614, %v1558
        %v1618 = vmul.f32 %v1614, %v1559
        %v1619 = vmul.f32 %v1614, %v1560
        %v1620 = vmul.f32 %v1614, %v1561
        %v1621 = vmul.f32 %v1614, %v1562
        %v1622 = vmul.f32 %v1614, %v1563
        %s1623 = sld [smem:[#allocation8 + $0x80]]
        %v1624 = vstv %s1623
        %v1625 = vmul.f32 %v1624, %v1569
        %v1626 = vmul.f32 %v1624, %v1575
        %v1627 = vmul.f32 %v1624, %v1581
        %v1628 = vmul.f32 %v1624, %v1587
        %v1629 = vmul.f32 %v1624, %v1593
        %v1630 = vmul.f32 %v1624, %v1599
        %v1631 = vmul.f32 %v1624, %v1605
        %v1632 = vmul.f32 %v1624, %v1611
        %v1633 = vadd.f32 %v1615, %v1625
        %v1634 = vadd.f32 %v1616, %v1626
        %v1635 = vadd.f32 %v1617, %v1627
        %v1636 = vadd.f32 %v1618, %v1628
        %v1637 = vadd.f32 %v1619, %v1629
        %v1638 = vadd.f32 %v1620, %v1630
        %v1639 = vadd.f32 %v1621, %v1631
        %v1640 = vadd.f32 %v1622, %v1632
        %1641 = vrot.lane.b32.xlu0 %v1633, 3
        %v1642 = vpop.permute.xlu0 %1641
        %1643 = vrot.lane.b32.xlu0 %v1634, 3
        %v1644 = vpop.permute.xlu0 %1643
        %1645 = vrot.lane.b32.xlu0 %v1635, 3
        %v1646 = vpop.permute.xlu0 %1645
        %1647 = vrot.lane.b32.xlu0 %v1636, 3
        %v1648 = vpop.permute.xlu0 %1647
        %1649 = vrot.lane.b32.xlu0 %v1637, 3
        %v1650 = vpop.permute.xlu0 %1649
        %1651 = vrot.lane.b32.xlu0 %v1638, 3
        %v1652 = vpop.permute.xlu0 %1651
        %1653 = vrot.lane.b32.xlu0 %v1639, 3
        %v1654 = vpop.permute.xlu0 %1653
        %1655 = vrot.lane.b32.xlu0 %v1640, 3
        %v1656 = vpop.permute.xlu0 %1655
        %v1657 = vlaneseq
        %v1658 = vand.u32 %v1657, 127
        %vm1659 = vcmp.lt.s32.totalorder %v1658, 3
        %v1660 = vsel %vm1659, %v1654, %v1656
        %v1661 = vsel %vm1659, %v1652, %v1654
        %v1662 = vsel %vm1659, %v1650, %v1652
        %v1663 = vsel %vm1659, %v1648, %v1650
        %v1664 = vsel %vm1659, %v1646, %v1648
        %v1665 = vsel %vm1659, %v1644, %v1646
        %v1666 = vsel %vm1659, %v1642, %v1644
        %v1667 = vsel %vm1659, %v1656, %v1642
        %vm1668 = vcmp.ge.s32.totalorder %v1612, 3
        %v1677 = vcombine.low %v1667, %v1666
        %v1678 = vcombine.low %v1665, %v1664
        %v1679 = vcombine.low %v1663, %v1662
        %v1680 = vcombine.low %v1661, %v1660
        %v1682 = vunpack.c.l.s4 1966171168
        %v1683 = vunpack.c.0.s8 %v1682
        %v1684 = vlaneseq
        %v1685 = vshrl.u32 %v1684, 7
        %v1686 = vsub.s32 %v1683, %v1685
        %v1687 = vrot.slane %v1677, %v1686
        %v1689 = vunpack.c.l.s4 1966171168
        %v1690 = vunpack.c.0.s8 %v1689
        %v1691 = vlaneseq
        %v1692 = vshrl.u32 %v1691, 7
        %v1693 = vsub.s32 %v1690, %v1692
        %v1694 = vrot.slane %v1678, %v1693
        %v1696 = vunpack.c.l.s4 1966171168
        %v1697 = vunpack.c.0.s8 %v1696
        %v1698 = vlaneseq
        %v1699 = vshrl.u32 %v1698, 7
        %v1700 = vsub.s32 %v1697, %v1699
        %v1701 = vrot.slane %v1679, %v1700
        %v1703 = vunpack.c.l.s4 1966171168
        %v1704 = vunpack.c.0.s8 %v1703
        %v1705 = vlaneseq
        %v1706 = vshrl.u32 %v1705, 7
        %v1707 = vsub.s32 %v1704, %v1706
        %v1708 = vrot.slane %v1680, %v1707
        %v1709 = vcombine.low %v1687, %v1694
        %v1710 = vcombine.low %v1701, %v1708
        %v1712 = vunpack.c.l.s4 1966171168
        %v1713 = vunpack.c.0.s8 %v1712
        %v1714 = vlaneseq
        %v1715 = vshrl.u32 %v1714, 7
        %v1716 = vsub.s32 %v1713, %v1715
        %v1717 = vrot.slane %v1709, %v1716
        %v1719 = vunpack.c.l.s4 1966171168
        %v1720 = vunpack.c.0.s8 %v1719
        %v1721 = vlaneseq
        %v1722 = vshrl.u32 %v1721, 7
        %v1723 = vsub.s32 %v1720, %v1722
        %v1724 = vrot.slane %v1710, %v1723
        %v1725 = vcombine.low %v1717, %v1724
        %v1727 = vsel %vm1668, %v1725, 0.0
        %v1728 = vadd.f32 %v1727, 0.0
        %s1729 = sld [smem:[#allocation8 + $0x1]]
        %v1730 = vstv %s1729
        %v1731 = vmul.f32 %v1730, %v1556
        %v1732 = vmul.f32 %v1730, %v1557
        %v1733 = vmul.f32 %v1730, %v1558
        %v1734 = vmul.f32 %v1730, %v1559
        %v1735 = vmul.f32 %v1730, %v1560
        %v1736 = vmul.f32 %v1730, %v1561
        %v1737 = vmul.f32 %v1730, %v1562
        %v1738 = vmul.f32 %v1730, %v1563
        %s1739 = sld [smem:[#allocation8 + $0x81]]
        %v1740 = vstv %s1739
        %v1741 = vmul.f32 %v1740, %v1569
        %v1742 = vmul.f32 %v1740, %v1575
        %v1743 = vmul.f32 %v1740, %v1581
        %v1744 = vmul.f32 %v1740, %v1587
        %v1745 = vmul.f32 %v1740, %v1593
        %v1746 = vmul.f32 %v1740, %v1599
        %v1747 = vmul.f32 %v1740, %v1605
        %v1748 = vmul.f32 %v1740, %v1611
        %v1749 = vadd.f32 %v1731, %v1741
        %v1750 = vadd.f32 %v1732, %v1742
        %v1751 = vadd.f32 %v1733, %v1743
        %v1752 = vadd.f32 %v1734, %v1744
        %v1753 = vadd.f32 %v1735, %v1745
        %v1754 = vadd.f32 %v1736, %v1746
        %v1755 = vadd.f32 %v1737, %v1747
        %v1756 = vadd.f32 %v1738, %v1748
        %1757 = vrot.lane.b32.xlu0 %v1749, 2
        %v1758 = vpop.permute.xlu0 %1757
        %1759 = vrot.lane.b32.xlu0 %v1750, 2
        %v1760 = vpop.permute.xlu0 %1759
        %1761 = vrot.lane.b32.xlu0 %v1751, 2
        %v1762 = vpop.permute.xlu0 %1761
        %1763 = vrot.lane.b32.xlu0 %v1752, 2
        %v1764 = vpop.permute.xlu0 %1763
        %1765 = vrot.lane.b32.xlu0 %v1753, 2
        %v1766 = vpop.permute.xlu0 %1765
        %1767 = vrot.lane.b32.xlu0 %v1754, 2
        %v1768 = vpop.permute.xlu0 %1767
        %1769 = vrot.lane.b32.xlu0 %v1755, 2
        %v1770 = vpop.permute.xlu0 %1769
        %1771 = vrot.lane.b32.xlu0 %v1756, 2
        %v1772 = vpop.permute.xlu0 %1771
        %vm1773 = vcmp.lt.s32.totalorder %v1658, 2
        %v1774 = vsel %vm1773, %v1770, %v1772
        %v1775 = vsel %vm1773, %v1768, %v1770
        %v1776 = vsel %vm1773, %v1766, %v1768
        %v1777 = vsel %vm1773, %v1764, %v1766
        %v1778 = vsel %vm1773, %v1762, %v1764
        %v1779 = vsel %vm1773, %v1760, %v1762
        %v1780 = vsel %vm1773, %v1758, %v1760
        %v1781 = vsel %vm1773, %v1772, %v1758
        %vm1782 = vcmp.ge.s32.totalorder %v1612, 2
        %v1791 = vcombine.low %v1781, %v1780
        %v1792 = vcombine.low %v1779, %v1778
        %v1793 = vcombine.low %v1777, %v1776
        %v1794 = vcombine.low %v1775, %v1774
        %v1796 = vunpack.c.l.s4 1966171168
        %v1797 = vunpack.c.0.s8 %v1796
        %v1798 = vlaneseq
        %v1799 = vshrl.u32 %v1798, 7
        %v1800 = vsub.s32 %v1797, %v1799
        %v1801 = vrot.slane %v1791, %v1800
        %v1803 = vunpack.c.l.s4 1966171168
        %v1804 = vunpack.c.0.s8 %v1803
        %v1805 = vlaneseq
        %v1806 = vshrl.u32 %v1805, 7
        %v1807 = vsub.s32 %v1804, %v1806
        %v1808 = vrot.slane %v1792, %v1807
        %v1810 = vunpack.c.l.s4 1966171168
        %v1811 = vunpack.c.0.s8 %v1810
        %v1812 = vlaneseq
        %v1813 = vshrl.u32 %v1812, 7
        %v1814 = vsub.s32 %v1811, %v1813
        %v1815 = vrot.slane %v1793, %v1814
        %v1817 = vunpack.c.l.s4 1966171168
        %v1818 = vunpack.c.0.s8 %v1817
        %v1819 = vlaneseq
        %v1820 = vshrl.u32 %v1819, 7
        %v1821 = vsub.s32 %v1818, %v1820
        %v1822 = vrot.slane %v1794, %v1821
        %v1823 = vcombine.low %v1801, %v1808
        %v1824 = vcombine.low %v1815, %v1822
        %v1826 = vunpack.c.l.s4 1966171168
        %v1827 = vunpack.c.0.s8 %v1826
        %v1828 = vlaneseq
        %v1829 = vshrl.u32 %v1828, 7
        %v1830 = vsub.s32 %v1827, %v1829
        %v1831 = vrot.slane %v1823, %v1830
        %v1833 = vunpack.c.l.s4 1966171168
        %v1834 = vunpack.c.0.s8 %v1833
        %v1835 = vlaneseq
        %v1836 = vshrl.u32 %v1835, 7
        %v1837 = vsub.s32 %v1834, %v1836
        %v1838 = vrot.slane %v1824, %v1837
        %v1839 = vcombine.low %v1831, %v1838
        %v1841 = vsel %vm1782, %v1839, 0.0
        %v1842 = vadd.f32 %v1728, %v1841
        %s1843 = sld [smem:[#allocation8 + $0x2]]
        %v1844 = vstv %s1843
        %v1845 = vmul.f32 %v1844, %v1556
        %v1846 = vmul.f32 %v1844, %v1557
        %v1847 = vmul.f32 %v1844, %v1558
        %v1848 = vmul.f32 %v1844, %v1559
        %v1849 = vmul.f32 %v1844, %v1560
        %v1850 = vmul.f32 %v1844, %v1561
        %v1851 = vmul.f32 %v1844, %v1562
        %v1852 = vmul.f32 %v1844, %v1563
        %s1853 = sld [smem:[#allocation8 + $0x82]]
        %v1854 = vstv %s1853
        %v1855 = vmul.f32 %v1854, %v1569
        %v1856 = vmul.f32 %v1854, %v1575
        %v1857 = vmul.f32 %v1854, %v1581
        %v1858 = vmul.f32 %v1854, %v1587
        %v1859 = vmul.f32 %v1854, %v1593
        %v1860 = vmul.f32 %v1854, %v1599
        %v1861 = vmul.f32 %v1854, %v1605
        %v1862 = vmul.f32 %v1854, %v1611
        %v1863 = vadd.f32 %v1845, %v1855
        %v1864 = vadd.f32 %v1846, %v1856
        %v1865 = vadd.f32 %v1847, %v1857
        %v1866 = vadd.f32 %v1848, %v1858
        %v1867 = vadd.f32 %v1849, %v1859
        %v1868 = vadd.f32 %v1850, %v1860
        %v1869 = vadd.f32 %v1851, %v1861
        %v1870 = vadd.f32 %v1852, %v1862
        %1871 = vrot.lane.b32.xlu0 %v1863, 1
        %v1872 = vpop.permute.xlu0 %1871
        %1873 = vrot.lane.b32.xlu0 %v1864, 1
        %v1874 = vpop.permute.xlu0 %1873
        %1875 = vrot.lane.b32.xlu0 %v1865, 1
        %v1876 = vpop.permute.xlu0 %1875
        %1877 = vrot.lane.b32.xlu0 %v1866, 1
        %v1878 = vpop.permute.xlu0 %1877
        %1879 = vrot.lane.b32.xlu0 %v1867, 1
        %v1880 = vpop.permute.xlu0 %1879
        %1881 = vrot.lane.b32.xlu0 %v1868, 1
        %v1882 = vpop.permute.xlu0 %1881
        %1883 = vrot.lane.b32.xlu0 %v1869, 1
        %v1884 = vpop.permute.xlu0 %1883
        %1885 = vrot.lane.b32.xlu0 %v1870, 1
        %v1886 = vpop.permute.xlu0 %1885
        %vm1887 = vcmp.lt.s32.totalorder %v1658, 1
        %v1888 = vsel %vm1887, %v1884, %v1886
        %v1889 = vsel %vm1887, %v1882, %v1884
        %v1890 = vsel %vm1887, %v1880, %v1882
        %v1891 = vsel %vm1887, %v1878, %v1880
        %v1892 = vsel %vm1887, %v1876, %v1878
        %v1893 = vsel %vm1887, %v1874, %v1876
        %v1894 = vsel %vm1887, %v1872, %v1874
        %v1895 = vsel %vm1887, %v1886, %v1872
        %vm1896 = vcmp.ge.s32.totalorder %v1612, 1
        %v1905 = vcombine.low %v1895, %v1894
        %v1906 = vcombine.low %v1893, %v1892
        %v1907 = vcombine.low %v1891, %v1890
        %v1908 = vcombine.low %v1889, %v1888
        %v1910 = vunpack.c.l.s4 1966171168
        %v1911 = vunpack.c.0.s8 %v1910
        %v1912 = vlaneseq
        %v1913 = vshrl.u32 %v1912, 7
        %v1914 = vsub.s32 %v1911, %v1913
        %v1915 = vrot.slane %v1905, %v1914
        %v1917 = vunpack.c.l.s4 1966171168
        %v1918 = vunpack.c.0.s8 %v1917
        %v1919 = vlaneseq
        %v1920 = vshrl.u32 %v1919, 7
        %v1921 = vsub.s32 %v1918, %v1920
        %v1922 = vrot.slane %v1906, %v1921
        %v1924 = vunpack.c.l.s4 1966171168
        %v1925 = vunpack.c.0.s8 %v1924
        %v1926 = vlaneseq
        %v1927 = vshrl.u32 %v1926, 7
        %v1928 = vsub.s32 %v1925, %v1927
        %v1929 = vrot.slane %v1907, %v1928
        %v1931 = vunpack.c.l.s4 1966171168
        %v1932 = vunpack.c.0.s8 %v1931
        %v1933 = vlaneseq
        %v1934 = vshrl.u32 %v1933, 7
        %v1935 = vsub.s32 %v1932, %v1934
        %v1936 = vrot.slane %v1908, %v1935
        %v1937 = vcombine.low %v1915, %v1922
        %v1938 = vcombine.low %v1929, %v1936
        %v1940 = vunpack.c.l.s4 1966171168
        %v1941 = vunpack.c.0.s8 %v1940
        %v1942 = vlaneseq
        %v1943 = vshrl.u32 %v1942, 7
        %v1944 = vsub.s32 %v1941, %v1943
        %v1945 = vrot.slane %v1937, %v1944
        %v1947 = vunpack.c.l.s4 1966171168
        %v1948 = vunpack.c.0.s8 %v1947
        %v1949 = vlaneseq
        %v1950 = vshrl.u32 %v1949, 7
        %v1951 = vsub.s32 %v1948, %v1950
        %v1952 = vrot.slane %v1938, %v1951
        %v1953 = vcombine.low %v1945, %v1952
        %v1955 = vsel %vm1896, %v1953, 0.0
        %v1956 = vadd.f32 %v1842, %v1955
        %s1957 = sld [smem:[#allocation8 + $0x3]]
        %v1958 = vstv %s1957
        %v1959 = vmul.f32 %v1958, %v1556
        %v1960 = vmul.f32 %v1958, %v1557
        %v1961 = vmul.f32 %v1958, %v1558
        %v1962 = vmul.f32 %v1958, %v1559
        %v1963 = vmul.f32 %v1958, %v1560
        %v1964 = vmul.f32 %v1958, %v1561
        %v1965 = vmul.f32 %v1958, %v1562
        %v1966 = vmul.f32 %v1958, %v1563
        %s1967 = sld [smem:[#allocation8 + $0x83]]
        %v1968 = vstv %s1967
        %v1969 = vmul.f32 %v1968, %v1569
        %v1970 = vmul.f32 %v1968, %v1575
        %v1971 = vmul.f32 %v1968, %v1581
        %v1972 = vmul.f32 %v1968, %v1587
        %v1973 = vmul.f32 %v1968, %v1593
        %v1974 = vmul.f32 %v1968, %v1599
        %v1975 = vmul.f32 %v1968, %v1605
        %v1976 = vmul.f32 %v1968, %v1611
        %v1977 = vadd.f32 %v1959, %v1969
        %v1978 = vadd.f32 %v1960, %v1970
        %v1979 = vadd.f32 %v1961, %v1971
        %v1980 = vadd.f32 %v1962, %v1972
        %v1981 = vadd.f32 %v1963, %v1973
        %v1982 = vadd.f32 %v1964, %v1974
        %v1983 = vadd.f32 %v1965, %v1975
        %v1984 = vadd.f32 %v1966, %v1976
        %v1993 = vcombine.low %v1977, %v1978
        %v1994 = vcombine.low %v1979, %v1980
        %v1995 = vcombine.low %v1981, %v1982
        %v1996 = vcombine.low %v1983, %v1984
        %v1998 = vunpack.c.l.s4 1966171168
        %v1999 = vunpack.c.0.s8 %v1998
        %v2000 = vlaneseq
        %v2001 = vshrl.u32 %v2000, 7
        %v2002 = vsub.s32 %v1999, %v2001
        %v2003 = vrot.slane %v1993, %v2002
        %v2005 = vunpack.c.l.s4 1966171168
        %v2006 = vunpack.c.0.s8 %v2005
        %v2007 = vlaneseq
        %v2008 = vshrl.u32 %v2007, 7
        %v2009 = vsub.s32 %v2006, %v2008
        %v2010 = vrot.slane %v1994, %v2009
        %v2012 = vunpack.c.l.s4 1966171168
        %v2013 = vunpack.c.0.s8 %v2012
        %v2014 = vlaneseq
        %v2015 = vshrl.u32 %v2014, 7
        %v2016 = vsub.s32 %v2013, %v2015
        %v2017 = vrot.slane %v1995, %v2016
        %v2019 = vunpack.c.l.s4 1966171168
        %v2020 = vunpack.c.0.s8 %v2019
        %v2021 = vlaneseq
        %v2022 = vshrl.u32 %v2021, 7
        %v2023 = vsub.s32 %v2020, %v2022
        %v2024 = vrot.slane %v1996, %v2023
        %v2025 = vcombine.low %v2003, %v2010
        %v2026 = vcombine.low %v2017, %v2024
        %v2028 = vunpack.c.l.s4 1966171168
        %v2029 = vunpack.c.0.s8 %v2028
        %v2030 = vlaneseq
        %v2031 = vshrl.u32 %v2030, 7
        %v2032 = vsub.s32 %v2029, %v2031
        %v2033 = vrot.slane %v2025, %v2032
        %v2035 = vunpack.c.l.s4 1966171168
        %v2036 = vunpack.c.0.s8 %v2035
        %v2037 = vlaneseq
        %v2038 = vshrl.u32 %v2037, 7
        %v2039 = vsub.s32 %v2036, %v2038
        %v2040 = vrot.slane %v2026, %v2039
        %v2041 = vcombine.low %v2033, %v2040
        %v2043 = vadd.f32 %v1956, %v2041
        %s2044 = sld [smem:[#allocation8 + $0x4]]
        %v2045 = vstv %s2044
        %v2046 = vmul.f32 %v2045, %v1556
        %v2047 = vmul.f32 %v2045, %v1557
        %v2048 = vmul.f32 %v2045, %v1558
        %v2049 = vmul.f32 %v2045, %v1559
        %v2050 = vmul.f32 %v2045, %v1560
        %v2051 = vmul.f32 %v2045, %v1561
        %v2052 = vmul.f32 %v2045, %v1562
        %v2053 = vmul.f32 %v2045, %v1563
        %s2054 = sld [smem:[#allocation8 + $0x84]]
        %v2055 = vstv %s2054
        %v2056 = vmul.f32 %v2055, %v1569
        %v2057 = vmul.f32 %v2055, %v1575
        %v2058 = vmul.f32 %v2055, %v1581
        %v2059 = vmul.f32 %v2055, %v1587
        %v2060 = vmul.f32 %v2055, %v1593
        %v2061 = vmul.f32 %v2055, %v1599
        %v2062 = vmul.f32 %v2055, %v1605
        %v2063 = vmul.f32 %v2055, %v1611
        %v2064 = vadd.f32 %v2046, %v2056
        %v2065 = vadd.f32 %v2047, %v2057
        %v2066 = vadd.f32 %v2048, %v2058
        %v2067 = vadd.f32 %v2049, %v2059
        %v2068 = vadd.f32 %v2050, %v2060
        %v2069 = vadd.f32 %v2051, %v2061
        %v2070 = vadd.f32 %v2052, %v2062
        %v2071 = vadd.f32 %v2053, %v2063
        %2072 = vrot.lane.b32.xlu0 %v2064, 127
        %v2073 = vpop.permute.xlu0 %2072
        %2074 = vrot.lane.b32.xlu0 %v2065, 127
        %v2075 = vpop.permute.xlu0 %2074
        %2076 = vrot.lane.b32.xlu0 %v2066, 127
        %v2077 = vpop.permute.xlu0 %2076
        %2078 = vrot.lane.b32.xlu0 %v2067, 127
        %v2079 = vpop.permute.xlu0 %2078
        %2080 = vrot.lane.b32.xlu0 %v2068, 127
        %v2081 = vpop.permute.xlu0 %2080
        %2082 = vrot.lane.b32.xlu0 %v2069, 127
        %v2083 = vpop.permute.xlu0 %2082
        %2084 = vrot.lane.b32.xlu0 %v2070, 127
        %v2085 = vpop.permute.xlu0 %2084
        %2086 = vrot.lane.b32.xlu0 %v2071, 127
        %v2087 = vpop.permute.xlu0 %2086
        %vm2088 = vcmp.lt.s32.totalorder %v1658, 127
        %v2089 = vsel %vm2088, %v2085, %v2087
        %v2090 = vsel %vm2088, %v2083, %v2085
        %v2091 = vsel %vm2088, %v2081, %v2083
        %v2092 = vsel %vm2088, %v2079, %v2081
        %v2093 = vsel %vm2088, %v2077, %v2079
        %v2094 = vsel %vm2088, %v2075, %v2077
        %v2095 = vsel %vm2088, %v2073, %v2075
        %v2096 = vsel %vm2088, %v2087, %v2073
        %vm2097 = vcmp.lt.s32.totalorder %v1612, 127
        %v2106 = vcombine.low %v2095, %v2094
        %v2107 = vcombine.low %v2093, %v2092
        %v2108 = vcombine.low %v2091, %v2090
        %v2109 = vcombine.low %v2089, %v2096
        %v2111 = vunpack.c.l.s4 1966171168
        %v2112 = vunpack.c.0.s8 %v2111
        %v2113 = vlaneseq
        %v2114 = vshrl.u32 %v2113, 7
        %v2115 = vsub.s32 %v2112, %v2114
        %v2116 = vrot.slane %v2106, %v2115
        %v2118 = vunpack.c.l.s4 1966171168
        %v2119 = vunpack.c.0.s8 %v2118
        %v2120 = vlaneseq
        %v2121 = vshrl.u32 %v2120, 7
        %v2122 = vsub.s32 %v2119, %v2121
        %v2123 = vrot.slane %v2107, %v2122
        %v2125 = vunpack.c.l.s4 1966171168
        %v2126 = vunpack.c.0.s8 %v2125
        %v2127 = vlaneseq
        %v2128 = vshrl.u32 %v2127, 7
        %v2129 = vsub.s32 %v2126, %v2128
        %v2130 = vrot.slane %v2108, %v2129
        %v2132 = vunpack.c.l.s4 1966171168
        %v2133 = vunpack.c.0.s8 %v2132
        %v2134 = vlaneseq
        %v2135 = vshrl.u32 %v2134, 7
        %v2136 = vsub.s32 %v2133, %v2135
        %v2137 = vrot.slane %v2109, %v2136
        %v2138 = vcombine.low %v2116, %v2123
        %v2139 = vcombine.low %v2130, %v2137
        %v2141 = vunpack.c.l.s4 1966171168
        %v2142 = vunpack.c.0.s8 %v2141
        %v2143 = vlaneseq
        %v2144 = vshrl.u32 %v2143, 7
        %v2145 = vsub.s32 %v2142, %v2144
        %v2146 = vrot.slane %v2138, %v2145
        %v2148 = vunpack.c.l.s4 1966171168
        %v2149 = vunpack.c.0.s8 %v2148
        %v2150 = vlaneseq
        %v2151 = vshrl.u32 %v2150, 7
        %v2152 = vsub.s32 %v2149, %v2151
        %v2153 = vrot.slane %v2139, %v2152
        %v2154 = vcombine.low %v2146, %v2153
        %v2156 = vsel %vm2097, %v2154, 0.0
        %v2157 = vadd.f32 %v2043, %v2156
        %s2158 = sld [smem:[#allocation8 + $0x5]]
        %v2159 = vstv %s2158
        %v2160 = vmul.f32 %v2159, %v1556
        %v2161 = vmul.f32 %v2159, %v1557
        %v2162 = vmul.f32 %v2159, %v1558
        %v2163 = vmul.f32 %v2159, %v1559
        %v2164 = vmul.f32 %v2159, %v1560
        %v2165 = vmul.f32 %v2159, %v1561
        %v2166 = vmul.f32 %v2159, %v1562
        %v2167 = vmul.f32 %v2159, %v1563
        %s2168 = sld [smem:[#allocation8 + $0x85]]
        %v2169 = vstv %s2168
        %v2170 = vmul.f32 %v2169, %v1569
        %v2171 = vmul.f32 %v2169, %v1575
        %v2172 = vmul.f32 %v2169, %v1581
        %v2173 = vmul.f32 %v2169, %v1587
        %v2174 = vmul.f32 %v2169, %v1593
        %v2175 = vmul.f32 %v2169, %v1599
        %v2176 = vmul.f32 %v2169, %v1605
        %v2177 = vmul.f32 %v2169, %v1611
        %v2178 = vadd.f32 %v2160, %v2170
        %v2179 = vadd.f32 %v2161, %v2171
        %v2180 = vadd.f32 %v2162, %v2172
        %v2181 = vadd.f32 %v2163, %v2173
        %v2182 = vadd.f32 %v2164, %v2174
        %v2183 = vadd.f32 %v2165, %v2175
        %v2184 = vadd.f32 %v2166, %v2176
        %v2185 = vadd.f32 %v2167, %v2177
        %2186 = vrot.lane.b32.xlu0 %v2178, 126
        %v2187 = vpop.permute.xlu0 %2186
        %2188 = vrot.lane.b32.xlu0 %v2179, 126
        %v2189 = vpop.permute.xlu0 %2188
        %2190 = vrot.lane.b32.xlu0 %v2180, 126
        %v2191 = vpop.permute.xlu0 %2190
        %2192 = vrot.lane.b32.xlu0 %v2181, 126
        %v2193 = vpop.permute.xlu0 %2192
        %2194 = vrot.lane.b32.xlu0 %v2182, 126
        %v2195 = vpop.permute.xlu0 %2194
        %2196 = vrot.lane.b32.xlu0 %v2183, 126
        %v2197 = vpop.permute.xlu0 %2196
        %2198 = vrot.lane.b32.xlu0 %v2184, 126
        %v2199 = vpop.permute.xlu0 %2198
        %2200 = vrot.lane.b32.xlu0 %v2185, 126
        %v2201 = vpop.permute.xlu0 %2200
        %vm2202 = vcmp.lt.s32.totalorder %v1658, 126
        %v2203 = vsel %vm2202, %v2199, %v2201
        %v2204 = vsel %vm2202, %v2197, %v2199
        %v2205 = vsel %vm2202, %v2195, %v2197
        %v2206 = vsel %vm2202, %v2193, %v2195
        %v2207 = vsel %vm2202, %v2191, %v2193
        %v2208 = vsel %vm2202, %v2189, %v2191
        %v2209 = vsel %vm2202, %v2187, %v2189
        %v2210 = vsel %vm2202, %v2201, %v2187
        %vm2211 = vcmp.lt.s32.totalorder %v1612, 126
        %v2220 = vcombine.low %v2209, %v2208
        %v2221 = vcombine.low %v2207, %v2206
        %v2222 = vcombine.low %v2205, %v2204
        %v2223 = vcombine.low %v2203, %v2210
        %v2225 = vunpack.c.l.s4 1966171168
        %v2226 = vunpack.c.0.s8 %v2225
        %v2227 = vlaneseq
        %v2228 = vshrl.u32 %v2227, 7
        %v2229 = vsub.s32 %v2226, %v2228
        %v2230 = vrot.slane %v2220, %v2229
        %v2232 = vunpack.c.l.s4 1966171168
        %v2233 = vunpack.c.0.s8 %v2232
        %v2234 = vlaneseq
        %v2235 = vshrl.u32 %v2234, 7
        %v2236 = vsub.s32 %v2233, %v2235
        %v2237 = vrot.slane %v2221, %v2236
        %v2239 = vunpack.c.l.s4 1966171168
        %v2240 = vunpack.c.0.s8 %v2239
        %v2241 = vlaneseq
        %v2242 = vshrl.u32 %v2241, 7
        %v2243 = vsub.s32 %v2240, %v2242
        %v2244 = vrot.slane %v2222, %v2243
        %v2246 = vunpack.c.l.s4 1966171168
        %v2247 = vunpack.c.0.s8 %v2246
        %v2248 = vlaneseq
        %v2249 = vshrl.u32 %v2248, 7
        %v2250 = vsub.s32 %v2247, %v2249
        %v2251 = vrot.slane %v2223, %v2250
        %v2252 = vcombine.low %v2230, %v2237
        %v2253 = vcombine.low %v2244, %v2251
        %v2255 = vunpack.c.l.s4 1966171168
        %v2256 = vunpack.c.0.s8 %v2255
        %v2257 = vlaneseq
        %v2258 = vshrl.u32 %v2257, 7
        %v2259 = vsub.s32 %v2256, %v2258
        %v2260 = vrot.slane %v2252, %v2259
        %v2262 = vunpack.c.l.s4 1966171168
        %v2263 = vunpack.c.0.s8 %v2262
        %v2264 = vlaneseq
        %v2265 = vshrl.u32 %v2264, 7
        %v2266 = vsub.s32 %v2263, %v2265
        %v2267 = vrot.slane %v2253, %v2266
        %v2268 = vcombine.low %v2260, %v2267
        %v2270 = vsel %vm2211, %v2268, 0.0
        %v2271 = vadd.f32 %v2157, %v2270
        %s2272 = sld [smem:[#allocation8 + $0x6]]
        %v2273 = vstv %s2272
        %v2274 = vmul.f32 %v2273, %v1556
        %v2275 = vmul.f32 %v2273, %v1557
        %v2276 = vmul.f32 %v2273, %v1558
        %v2277 = vmul.f32 %v2273, %v1559
        %v2278 = vmul.f32 %v2273, %v1560
        %v2279 = vmul.f32 %v2273, %v1561
        %v2280 = vmul.f32 %v2273, %v1562
        %v2281 = vmul.f32 %v2273, %v1563
        %s2282 = sld [smem:[#allocation8 + $0x86]]
        %v2283 = vstv %s2282
        %v2284 = vmul.f32 %v2283, %v1569
        %v2285 = vmul.f32 %v2283, %v1575
        %v2286 = vmul.f32 %v2283, %v1581
        %v2287 = vmul.f32 %v2283, %v1587
        %v2288 = vmul.f32 %v2283, %v1593
        %v2289 = vmul.f32 %v2283, %v1599
        %v2290 = vmul.f32 %v2283, %v1605
        %v2291 = vmul.f32 %v2283, %v1611
        %v2292 = vadd.f32 %v2274, %v2284
        %v2293 = vadd.f32 %v2275, %v2285
        %v2294 = vadd.f32 %v2276, %v2286
        %v2295 = vadd.f32 %v2277, %v2287
        %v2296 = vadd.f32 %v2278, %v2288
        %v2297 = vadd.f32 %v2279, %v2289
        %v2298 = vadd.f32 %v2280, %v2290
        %v2299 = vadd.f32 %v2281, %v2291
        %2300 = vrot.lane.b32.xlu0 %v2292, 125
        %v2301 = vpop.permute.xlu0 %2300
        %2302 = vrot.lane.b32.xlu0 %v2293, 125
        %v2303 = vpop.permute.xlu0 %2302
        %2304 = vrot.lane.b32.xlu0 %v2294, 125
        %v2305 = vpop.permute.xlu0 %2304
        %2306 = vrot.lane.b32.xlu0 %v2295, 125
        %v2307 = vpop.permute.xlu0 %2306
        %2308 = vrot.lane.b32.xlu0 %v2296, 125
        %v2309 = vpop.permute.xlu0 %2308
        %2310 = vrot.lane.b32.xlu0 %v2297, 125
        %v2311 = vpop.permute.xlu0 %2310
        %2312 = vrot.lane.b32.xlu0 %v2298, 125
        %v2313 = vpop.permute.xlu0 %2312
        %2314 = vrot.lane.b32.xlu0 %v2299, 125
        %v2315 = vpop.permute.xlu0 %2314
        %vm2316 = vcmp.lt.s32.totalorder %v1658, 125
        %v2317 = vsel %vm2316, %v2313, %v2315
        %v2318 = vsel %vm2316, %v2311, %v2313
        %v2319 = vsel %vm2316, %v2309, %v2311
        %v2320 = vsel %vm2316, %v2307, %v2309
        %v2321 = vsel %vm2316, %v2305, %v2307
        %v2322 = vsel %vm2316, %v2303, %v2305
        %v2323 = vsel %vm2316, %v2301, %v2303
        %v2324 = vsel %vm2316, %v2315, %v2301
        %vm2325 = vcmp.lt.s32.totalorder %v1612, 125
        %v2334 = vcombine.low %v2323, %v2322
        %v2335 = vcombine.low %v2321, %v2320
        %v2336 = vcombine.low %v2319, %v2318
        %v2337 = vcombine.low %v2317, %v2324
        %v2339 = vunpack.c.l.s4 1966171168
        %v2340 = vunpack.c.0.s8 %v2339
        %v2341 = vlaneseq
        %v2342 = vshrl.u32 %v2341, 7
        %v2343 = vsub.s32 %v2340, %v2342
        %v2344 = vrot.slane %v2334, %v2343
        %v2346 = vunpack.c.l.s4 1966171168
        %v2347 = vunpack.c.0.s8 %v2346
        %v2348 = vlaneseq
        %v2349 = vshrl.u32 %v2348, 7
        %v2350 = vsub.s32 %v2347, %v2349
        %v2351 = vrot.slane %v2335, %v2350
        %v2353 = vunpack.c.l.s4 1966171168
        %v2354 = vunpack.c.0.s8 %v2353
        %v2355 = vlaneseq
        %v2356 = vshrl.u32 %v2355, 7
        %v2357 = vsub.s32 %v2354, %v2356
        %v2358 = vrot.slane %v2336, %v2357
        %v2360 = vunpack.c.l.s4 1966171168
        %v2361 = vunpack.c.0.s8 %v2360
        %v2362 = vlaneseq
        %v2363 = vshrl.u32 %v2362, 7
        %v2364 = vsub.s32 %v2361, %v2363
        %v2365 = vrot.slane %v2337, %v2364
        %v2366 = vcombine.low %v2344, %v2351
        %v2367 = vcombine.low %v2358, %v2365
        %v2369 = vunpack.c.l.s4 1966171168
        %v2370 = vunpack.c.0.s8 %v2369
        %v2371 = vlaneseq
        %v2372 = vshrl.u32 %v2371, 7
        %v2373 = vsub.s32 %v2370, %v2372
        %v2374 = vrot.slane %v2366, %v2373
        %v2376 = vunpack.c.l.s4 1966171168
        %v2377 = vunpack.c.0.s8 %v2376
        %v2378 = vlaneseq
        %v2379 = vshrl.u32 %v2378, 7
        %v2380 = vsub.s32 %v2377, %v2379
        %v2381 = vrot.slane %v2367, %v2380
        %v2382 = vcombine.low %v2374, %v2381
        %v2384 = vsel %vm2325, %v2382, 0.0
        %v2385 = vadd.f32 %v2271, %v2384
        %v2386 = vxor.u32 %v2385, 2147483648
        %v2387 = vmul.f32 %v2386, 1.442695
        %v2388 = vpow.pop %v2387
        %v2389 = vadd.f32 %v2388, 1.0
        %v2390 = vrcp.pop %v2389
        %v2391 = vmul.f32 1.0, %v2390
        %v2393 = vlaneseq
        %v2394 = vshrl.u32 %v2393, 7
        %v2395 = vsub.s32 0, %v2394
        %v2396 = vrot.slane %v2391, %v2395
        %v2397 = vlaneseq
        %v2398 = vshrl.u32 %v2397, 7
        %v2399 = vsub.s32 1, %v2398
        %v2400 = vrot.slane %v2391, %v2399
        %v2401 = vlaneseq
        %v2402 = vshrl.u32 %v2401, 7
        %v2403 = vsub.s32 2, %v2402
        %v2404 = vrot.slane %v2391, %v2403
        %v2405 = vlaneseq
        %v2406 = vshrl.u32 %v2405, 7
        %v2407 = vsub.s32 3, %v2406
        %v2408 = vrot.slane %v2391, %v2407
        %v2409 = vlaneseq
        %v2410 = vshrl.u32 %v2409, 7
        %v2411 = vsub.s32 4, %v2410
        %v2412 = vrot.slane %v2391, %v2411
        %v2413 = vlaneseq
        %v2414 = vshrl.u32 %v2413, 7
        %v2415 = vsub.s32 5, %v2414
        %v2416 = vrot.slane %v2391, %v2415
        %v2417 = vlaneseq
        %v2418 = vshrl.u32 %v2417, 7
        %v2419 = vsub.s32 6, %v2418
        %v2420 = vrot.slane %v2391, %v2419
        %v2421 = vlaneseq
        %v2422 = vshrl.u32 %v2421, 7
        %v2423 = vsub.s32 7, %v2422
        %v2424 = vrot.slane %v2391, %v2423
        loop: start=0, step=1, limit=4
        $region63: #{tpu_custom_call.1} parent=39 // loop_pre_header
          _
        $region64: #{tpu_custom_call.1} parent=39 // loop_header
          %s2434 = sphi 0, %s2438
          %p2435 = scmp.ge.s32.totalorder %s2434, 4
        $region65: #{tpu_custom_call.1} parent=39 // loop_header_branch
          %2437 = sbr.rel (%p2435) target = $region69
        $region66: #{tpu_custom_call.1} parent=39 // loop_body
          %s2439 = smul.u32 %s2434, 8
          %s2440 = sshra.s32 %s2439, 3
          %s2441 = sand.u32 %s2439, 7
          %s2442 = smul.u32 %s2440, 8
          %s2443 = smul.addr %s2442, 8
          %s2444 = scalar_lea.vmem %s225, %s2443 [#allocation4]
          %v2445 = vld [vmem:[%s2444] sm:$0xff]
          %v2446 = vld [vmem:[%s2444 + $0x8] sm:$0xff]
          %v2447 = vld [vmem:[%s2444 + $0x10] sm:$0xff]
          %v2448 = vld [vmem:[%s2444 + $0x18] sm:$0xff]
          %v2449 = vld [vmem:[%s2444 + $0x20] sm:$0xff]
          %v2450 = vld [vmem:[%s2444 + $0x28] sm:$0xff]
          %v2451 = vld [vmem:[%s2444 + $0x30] sm:$0xff]
          %v2452 = vld [vmem:[%s2444 + $0x38] sm:$0xff]
          %s2453 = scalar_lea.vmem [#allocation3], %s2439
          %v2454 = vld [vmem:[%s2453] sm:$0xff]
          %2456 = vset.pattern.permute.xlu0 0
          %2457 = vperm.xlu0 %2456, %v2454
          %v2458 = vpop.permute.xlu0 %2457
          %v2460 = vmul.f32 %v2445, %v2458
          %v2461 = vmul.f32 %v2446, %v2458
          %v2462 = vmul.f32 %v2447, %v2458
          %v2463 = vmul.f32 %v2448, %v2458
          %v2464 = vmul.f32 %v2449, %v2458
          %v2465 = vmul.f32 %v2450, %v2458
          %v2466 = vmul.f32 %v2451, %v2458
          %v2467 = vmul.f32 %v2452, %v2458
          %v2468 = vmul.f32 %v2460, %v2396
          %v2469 = vmul.f32 %v2461, %v2400
          %v2470 = vmul.f32 %v2462, %v2404
          %v2471 = vmul.f32 %v2463, %v2408
          %v2472 = vmul.f32 %v2464, %v2412
          %v2473 = vmul.f32 %v2465, %v2416
          %v2474 = vmul.f32 %v2466, %v2420
          %v2475 = vmul.f32 %v2467, %v2424
          %s2476 = smul.addr %s2442, 8
          %s2477 = scalar_lea.vmem %s256, %s2476 [#allocation9]
          %2478 = vst [vmem:[%s2477] sm:$0xff] %v2468
          %2479 = vst [vmem:[%s2477 + $0x8] sm:$0xff] %v2469
          %2480 = vst [vmem:[%s2477 + $0x10] sm:$0xff] %v2470
          %2481 = vst [vmem:[%s2477 + $0x18] sm:$0xff] %v2471
          %2482 = vst [vmem:[%s2477 + $0x20] sm:$0xff] %v2472
          %2483 = vst [vmem:[%s2477 + $0x28] sm:$0xff] %v2473
          %2484 = vst [vmem:[%s2477 + $0x30] sm:$0xff] %v2474
          %2485 = vst [vmem:[%s2477 + $0x38] sm:$0xff] %v2475
        $region67: #{tpu_custom_call.1} parent=39 // loop_footer
          %s2438 = sadd.s32 1, %s2434
        $region68: #{tpu_custom_call.1} parent=39 // loop_footer_branch
          %2433 = sbr.rel target = $region64
        $region69: #{tpu_custom_call.1} parent=39 // loop_exit
          _
        %s2486 = sand.u32 %s141, 1
        %s2487 = scalar_lea.sflag [#allocation6], %s2486
        %s2488 = sand.u32 %s141, 1
        %s2489 = smul.addr %s2488, 256
        %s2490 = scalar_lea.vmem [#allocation9], %s2489
        // Predicated region
        $region70: #{tpu_custom_call.1} parent=39 // pred_check
          %p2491 = pneg %p151
        $region71: #{tpu_custom_call.1} parent=39 // pred_check_branch
          %2493 = sbr.rel (%p2491) target = $region73
        $region72: #{tpu_custom_call.1} parent=39 // pred_region
          %s2495 = ssub.s32 4096, 4096
          %2496 = vsyncadd %s2487, %s2495
          %s2497 = smul.addr %s23, 32
          %s2498 = smul.addr %s2497, 128
          %s2499 = scalar_lea.hbm %s5, %s2498
          %s2500 = sshll.u32 %s2490, 4
          %s2501 = int_to_ptr.vmem [resolvable:$true] %s2500
          %2506 = dma.vmem_to_hbm [thread:$0]  %s2501, 4096, %s2499, %s2487, 1024, 1024, 64
        $region73: #{tpu_custom_call.1} parent=39 // pred_fallthru
          _
      $region40: #{tpu_custom_call.1} parent=5 // pred_fallthru
        _
      %p2507 = scmp.le.s32.totalorder 2, %s18
      // Predicated region
      $region74: #{tpu_custom_call.1} parent=5 // pred_check
        %p2508 = pneg %p2507
      $region75: #{tpu_custom_call.1} parent=5 // pred_check_branch
        %2510 = sbr.rel (%p2508) target = $region77
      $region76: #{tpu_custom_call.1} parent=5 // pred_region
        %s2511 = ssub.s32 %s18, 2
        // Predicated region
        $region78: #{tpu_custom_call.1} parent=76 // pred_check
          %p2512 = pneg %p157
        $region79: #{tpu_custom_call.1} parent=76 // pred_check_branch
          %2514 = sbr.rel (%p2512) target = $region81
        $region80: #{tpu_custom_call.1} parent=76 // pred_region
          %s2515 = sand.u32 %s142, 1
          %s2516 = scalar_lea.sflag [#allocation6], %s2515
          %s2517 = sand.u32 %s142, 1
          %s2518 = smul.addr %s2517, 256
          %s2519 = scalar_lea.vmem [#allocation9], %s2518
          %2520 = dma.done %s2516, 4096
        $region81: #{tpu_custom_call.1} parent=76 // pred_fallthru
          _
      $region77: #{tpu_custom_call.1} parent=5 // pred_fallthru
        _
    $region6: #{tpu_custom_call.1} parent=1 // loop_footer
      %s22 = sadd.s32 1, %s18
    $region7: #{tpu_custom_call.1} parent=1 // loop_footer_branch
      %17 = sbr.rel target = $region3
    $region8: #{tpu_custom_call.1} parent=1 // loop_exit
      _
    %2521 = vsyncpa [#allocation5], 1
    %s2522 = scalar_lea.sflag [#allocation5], 1
    %2523 = vsyncpa %s2522, 1
    %2524 = vsyncpa [#allocation6], 1
    %s2525 = scalar_lea.sflag [#allocation6], 1
    %2526 = vsyncpa %s2525, 1
    %2527 = vsyncpa [#allocation7], 1
    %s2528 = scalar_lea.sflag [#allocation7], 1
    %2529 = vsyncpa %s2528, 1

</llo_original>
